<compile_context>
chip_gen: v5e
topology: v5e:2x2
jax: 0.10.0
libtpu: 0.0.40
codegen_flags: <defaults>
</compile_context>

<pallas_src>
import jax
import jax.numpy as jnp
from jax.experimental import pallas as pl
from jax.experimental.pallas import tpu as pltpu

INPUT_SIZE = 13
INPUT_AUG = INPUT_SIZE + 1     # +1 constant-1 column that carries the fc1 bias
HIDDEN1_SIZE = 1024
HIDDEN2_SIZE = 512
OUTPUT_SIZE = 3
OUT_PAD = 128                  # lane-dense padded output width (kernel-internal)
TB_MAX = 1024                  # max batch tile (fits easily in v7x's 64 MiB VMEM)
GRAN = 256                     # batch-tile granularity (multiple of 8 and 128)


def _cdiv(a, b):
    return -(-a // b)


def _round_up(v, m):
    return _cdiv(v, m) * m


def _choose_tiling(B):
    """Pick (TB, B_pad). Static Python (shapes are static).

    - B <= 512: single tile, sublane-rounded (waste <= 7 rows).
    - B  > 512: pad to a multiple of GRAN (waste <= 255 rows) and pick the largest
      TB = GRAN*d that divides B_pad, stays <= TB_MAX, and yields >= 2 grid tiles
      so both v7x TensorCores get work.
    """
    if B <= 512:
        TB = max(8, _round_up(B, 8))
        return TB, TB
    B_pad = _round_up(B, GRAN)
    n = B_pad // GRAN          # >= 3
    best = 1
    for d in range(1, n + 1):
        if n % d == 0 and GRAN * d <= TB_MAX and n // d >= 2:
            best = d
    return GRAN * best, B_pad


def _mlp_kernel(x_ref, w1_ref, w2_ref, b2_ref, w3_ref, b3_ref, o_ref):
    # Layer 1: [TB, 14](bf16) @ [14, 1024](bf16, bias folded in) -> f32 acc.
    x_bf = x_ref[...].astype(jnp.bfloat16)
    z1 = jnp.dot(x_bf, w1_ref[...], preferred_element_type=jnp.float32)
    # ReLU + next-layer operand cast in bf16 (commutes exactly with the downcast).
    z1 = jnp.maximum(z1.astype(jnp.bfloat16), 0)

    # Layer 2: [TB, 1024](bf16) @ [1024, 512](bf16) -> f32 acc, +b2 (f32), bf16 ReLU.
    z2 = jnp.dot(z1, w2_ref[...], preferred_element_type=jnp.float32)
    z2 = jnp.maximum((z2 + b2_ref[...]).astype(jnp.bfloat16), 0)

    # Layer 3: [TB, 512](bf16) @ [512, 128](bf16, zero-padded) -> f32, +b3 (padded).
    z3 = jnp.dot(z2, w3_ref[...], preferred_element_type=jnp.float32)
    # Lane-dense [TB, 128] store (unmasked vst); wrapper slices the first 3 columns.
    o_ref[...] = (z3 + b3_ref[...]).astype(o_ref.dtype)


def example_nn_forward(x, params):
    """x: [B, 13] float32. params: dict (bf16 weights [in,out], f32 biases).
    Returns [B, 3] float32."""
    w1, w2, b2, w3, b3 = (params["w1"], params["w2"], params["b2"],
                          params["w3"], params["b3"])
    B = x.shape[0]

    # Append the constant-1 column that carries the fc1 bias (13 -> 14 features).
    x_aug = jnp.concatenate([x, jnp.ones((B, 1), x.dtype)], axis=1)

    TB, B_pad = _choose_tiling(B)
    if B_pad != B:
        x_aug = jnp.pad(x_aug, ((0, B_pad - B), (0, 0)))
    num_tiles = B_pad // TB

    # Advisory cost estimate for XLA scheduling around the custom call.
    flops = 2 * B_pad * (INPUT_AUG * HIDDEN1_SIZE
                         + HIDDEN1_SIZE * HIDDEN2_SIZE
                         + HIDDEN2_SIZE * OUT_PAD)
    bytes_accessed = (
        B_pad * INPUT_AUG * 4                          # x stream (f32)
        + B_pad * OUT_PAD * 4                          # padded output stream (f32)
        + 2 * (INPUT_AUG * HIDDEN1_SIZE                # bf16 weights (read once, resident)
               + HIDDEN1_SIZE * HIDDEN2_SIZE
               + HIDDEN2_SIZE * OUT_PAD)
        + 4 * (HIDDEN2_SIZE + OUT_PAD)                 # f32 biases (b2, padded b3)
    )

    # Weights/biases use a constant index_map -> DMA'd once, resident across the grid.
    resident = lambda a: pl.BlockSpec(a.shape, lambda i: tuple(0 for _ in a.shape))

    grid_spec = pltpu.PrefetchScalarGridSpec(
        num_scalar_prefetch=0,
        grid=(num_tiles,),
        in_specs=[
            pl.BlockSpec((TB, INPUT_AUG), lambda i: (i, 0)),    # x: batch-tiled
            resident(w1),
            resident(w2), resident(b2),
            resident(w3), resident(b3),
        ],
        out_specs=pl.BlockSpec((TB, OUT_PAD), lambda i: (i, 0)),
    )

    out_padded = pl.pallas_call(
        _mlp_kernel,
        out_shape=jax.ShapeDtypeStruct((B_pad, OUT_PAD), jnp.float32),
        grid_spec=grid_spec,
        compiler_params=pltpu.CompilerParams(
            dimension_semantics=("parallel",),          # shard batch tiles across TCs (v7x)
            vmem_limit_bytes=32 * 1024 * 1024,          # ~2x actual footprint at TB=1024
        ),
        cost_estimate=pl.CostEstimate(
            flops=flops, transcendentals=0, bytes_accessed=bytes_accessed),
    )(x_aug, w1, w2, b2, w3, b3)

    return out_padded[:B, :OUTPUT_SIZE]


def init_params(key):
    """Deterministic init mimicking nn.Linear's default U(-1/sqrt(fan_in), +1/sqrt(fan_in)).
    Weights stored bf16 as [in, out]; b1 folded into w1 as an extra input row;
    w3/b3 zero-padded to OUT_PAD output lanes; b2/b3 kept f32."""
    ks = jax.random.split(key, 6)

    def uniform(k, shape, fan_in):
        bound = 1.0 / float(fan_in) ** 0.5
        return jax.random.uniform(k, shape, jnp.float32, -bound, bound)

    # fc1: weight [13, 1024] + bias [1, 1024] folded as the 14th input row.
    w1 = uniform(ks[0], (INPUT_SIZE, HIDDEN1_SIZE), INPUT_SIZE)
    b1 = uniform(ks[1], (1, HIDDEN1_SIZE), INPUT_SIZE)
    w1_aug = jnp.concatenate([w1, b1], axis=0).astype(jnp.bfloat16)   # [14, 1024]

    # fc2: weight [1024, 512] bf16, bias [1, 512] f32.
    w2 = uniform(ks[2], (HIDDEN1_SIZE, HIDDEN2_SIZE), HIDDEN1_SIZE).astype(jnp.bfloat16)
    b2 = uniform(ks[3], (1, HIDDEN2_SIZE), HIDDEN1_SIZE)

    # fc3: weight [512, 3] / bias [1, 3], zero-padded to 128 output lanes.
    w3 = uniform(ks[4], (HIDDEN2_SIZE, OUTPUT_SIZE), HIDDEN2_SIZE)
    b3 = uniform(ks[5], (1, OUTPUT_SIZE), HIDDEN2_SIZE)
    w3 = jnp.pad(w3, ((0, 0), (0, OUT_PAD - OUTPUT_SIZE))).astype(jnp.bfloat16)
    b3 = jnp.pad(b3, ((0, 0), (0, OUT_PAD - OUTPUT_SIZE)))

    return {"w1": w1_aug, "w2": w2, "b2": b2, "w3": w3, "b3": b3}


def reference_forward(x, p):
    """Pure-JAX reference using the same bf16-operand / f32-accumulate recipe."""
    x_aug = jnp.concatenate([x, jnp.ones((x.shape[0], 1), x.dtype)], axis=1)
    z1 = jnp.dot(x_aug.astype(jnp.bfloat16), p["w1"],
                 preferred_element_type=jnp.float32)
    z1 = jnp.maximum(z1.astype(jnp.bfloat16), 0)
    z2 = jnp.dot(z1, p["w2"], preferred_element_type=jnp.float32) + p["b2"]
    z2 = jnp.maximum(z2.astype(jnp.bfloat16), 0)
    z3 = jnp.dot(z2, p["w3"], preferred_element_type=jnp.float32) + p["b3"]
    return z3[:, :OUTPUT_SIZE]


if __name__ == "__main__":
    key = jax.random.PRNGKey(0)
    k_params, k_x = jax.random.split(key)

    params = init_params(k_params)
    batch = 8
    x = jax.random.normal(k_x, (batch, INPUT_SIZE), jnp.float32)

    out = example_nn_forward(x, params)
    out = jax.block_until_ready(out)

    ref = reference_forward(x, params)
    assert out.shape == (batch, OUTPUT_SIZE)
    assert bool(jnp.allclose(out, ref, atol=1e-2, rtol=1e-2)), "mismatch vs JAX reference"

    print("KERNEL_OK")
</pallas_src>

<mosaic_0001>
module attributes {stable_mosaic.version = 11 : i64} {
  func.func @_mlp_kernel(%arg0: i32, %arg1: memref<8x14xf32, #tpu.memory_space<vmem>>, %arg2: memref<14x1024xbf16, #tpu.memory_space<vmem>>, %arg3: memref<1024x512xbf16, #tpu.memory_space<vmem>>, %arg4: memref<1x512xf32, #tpu.memory_space<vmem>>, %arg5: memref<512x128xbf16, #tpu.memory_space<vmem>>, %arg6: memref<1x128xf32, #tpu.memory_space<vmem>>, %arg7: memref<8x128xf32, #tpu.memory_space<vmem>>) attributes {dimension_semantics = [#tpu.dimension_semantics<parallel>], iteration_bounds = array<i64: 1>, scalar_prefetch = 0 : i64, scratch_operands = 0 : i64, tpu.core_type = #tpu.core_type<tc>, window_params = [{transform_indices = @transform_0, window_bounds = array<i64: 8, 14>}, {pipeline_mode = #tpu.pipeline_mode<synchronous>, transform_indices = @transform_1, window_bounds = array<i64: 14, 1024>}, {pipeline_mode = #tpu.pipeline_mode<synchronous>, transform_indices = @transform_2, window_bounds = array<i64: 1024, 512>}, {pipeline_mode = #tpu.pipeline_mode<synchronous>, transform_indices = @transform_3, window_bounds = array<i64: 1, 512>}, {pipeline_mode = #tpu.pipeline_mode<synchronous>, transform_indices = @transform_4, window_bounds = array<i64: 512, 128>}, {pipeline_mode = #tpu.pipeline_mode<synchronous>, transform_indices = @transform_5, window_bounds = array<i64: 1, 128>}, {transform_indices = @transform_6, window_bounds = array<i64: 8, 128>}]} {
    %c0 = arith.constant 0 : index
    %c0_0 = arith.constant 0 : index
    %0 = vector.load %arg1[%c0, %c0_0] : memref<8x14xf32, #tpu.memory_space<vmem>>, vector<8x14xf32>
    %1 = arith.truncf %0 : vector<8x14xf32> to vector<8x14xbf16>
    %c0_1 = arith.constant 0 : index
    %c0_2 = arith.constant 0 : index
    %2 = vector.load %arg2[%c0_1, %c0_2] : memref<14x1024xbf16, #tpu.memory_space<vmem>>, vector<14x1024xbf16>
    %cst = arith.constant dense<0.000000e+00> : vector<8x1024xf32>
    %3 = tpu.matmul %1, %2, %cst {dimension_numbers = #tpu.dot_dimension_numbers<[1], [0], [0], [1], [0, 0, 1, 1], [], []>} : vector<8x14xbf16>, vector<14x1024xbf16>, vector<8x1024xf32> -> vector<8x1024xf32>
    %4 = arith.truncf %3 : vector<8x1024xf32> to vector<8x1024xbf16>
    %cst_3 = arith.constant 0.000000e+00 : bf16
    %5 = vector.broadcast %cst_3 : bf16 to vector<8x1024xbf16>
    %6 = arith.maximumf %4, %5 : vector<8x1024xbf16>
    %c0_4 = arith.constant 0 : index
    %c0_5 = arith.constant 0 : index
    %7 = vector.load %arg3[%c0_4, %c0_5] : memref<1024x512xbf16, #tpu.memory_space<vmem>>, vector<1024x512xbf16>
    %cst_6 = arith.constant dense<0.000000e+00> : vector<8x512xf32>
    %8 = tpu.matmul %6, %7, %cst_6 {dimension_numbers = #tpu.dot_dimension_numbers<[1], [0], [0], [1], [0, 0, 1, 1], [], []>} : vector<8x1024xbf16>, vector<1024x512xbf16>, vector<8x512xf32> -> vector<8x512xf32>
    %c0_7 = arith.constant 0 : index
    %c0_8 = arith.constant 0 : index
    %9 = vector.load %arg4[%c0_7, %c0_8] : memref<1x512xf32, #tpu.memory_space<vmem>>, vector<1x512xf32>
    %10 = vector.broadcast %9 : vector<1x512xf32> to vector<8x512xf32>
    %11 = arith.addf %8, %10 : vector<8x512xf32>
    %12 = arith.truncf %11 : vector<8x512xf32> to vector<8x512xbf16>
    %cst_9 = arith.constant 0.000000e+00 : bf16
    %13 = vector.broadcast %cst_9 : bf16 to vector<8x512xbf16>
    %14 = arith.maximumf %12, %13 : vector<8x512xbf16>
    %c0_10 = arith.constant 0 : index
    %c0_11 = arith.constant 0 : index
    %15 = vector.load %arg5[%c0_10, %c0_11] : memref<512x128xbf16, #tpu.memory_space<vmem>>, vector<512x128xbf16>
    %cst_12 = arith.constant dense<0.000000e+00> : vector<8x128xf32>
    %16 = tpu.matmul %14, %15, %cst_12 {dimension_numbers = #tpu.dot_dimension_numbers<[1], [0], [0], [1], [0, 0, 1, 1], [], []>} : vector<8x512xbf16>, vector<512x128xbf16>, vector<8x128xf32> -> vector<8x128xf32>
    %c0_13 = arith.constant 0 : index
    %c0_14 = arith.constant 0 : index
    %17 = vector.load %arg6[%c0_13, %c0_14] : memref<1x128xf32, #tpu.memory_space<vmem>>, vector<1x128xf32>
    %18 = vector.broadcast %17 : vector<1x128xf32> to vector<8x128xf32>
    %19 = arith.addf %16, %18 : vector<8x128xf32>
    %c0_15 = arith.constant 0 : index
    %c0_16 = arith.constant 0 : index
    %20 = vector.load %arg7[%c0_15, %c0_16] : memref<8x128xf32, #tpu.memory_space<vmem>>, vector<8x128xf32>
    tpu.vector_store %arg7[%c0_15, %c0_16], %19 {strides = array<i32>} : memref<8x128xf32, #tpu.memory_space<vmem>>, vector<8x128xf32>,
    return
  }
  func.func @transform_0(%arg0: i32) -> (i32, i32) {
    %c0_i32 = arith.constant 0 : i32
    %c0_i32_0 = arith.constant 0 : i32
    return %arg0, %c0_i32 : i32, i32
  }
  func.func @transform_1(%arg0: i32) -> (i32, i32) {
    %c0_i32 = arith.constant 0 : i32
    %c0_i32_0 = arith.constant 0 : i32
    %c0_i32_1 = arith.constant 0 : i32
    return %c0_i32, %c0_i32_0 : i32, i32
  }
  func.func @transform_2(%arg0: i32) -> (i32, i32) {
    %c0_i32 = arith.constant 0 : i32
    %c0_i32_0 = arith.constant 0 : i32
    %c0_i32_1 = arith.constant 0 : i32
    return %c0_i32, %c0_i32_0 : i32, i32
  }
  func.func @transform_3(%arg0: i32) -> (i32, i32) {
    %c0_i32 = arith.constant 0 : i32
    %c0_i32_0 = arith.constant 0 : i32
    %c0_i32_1 = arith.constant 0 : i32
    return %c0_i32, %c0_i32_0 : i32, i32
  }
  func.func @transform_4(%arg0: i32) -> (i32, i32) {
    %c0_i32 = arith.constant 0 : i32
    %c0_i32_0 = arith.constant 0 : i32
    %c0_i32_1 = arith.constant 0 : i32
    return %c0_i32, %c0_i32_0 : i32, i32
  }
  func.func @transform_5(%arg0: i32) -> (i32, i32) {
    %c0_i32 = arith.constant 0 : i32
    %c0_i32_0 = arith.constant 0 : i32
    %c0_i32_1 = arith.constant 0 : i32
    return %c0_i32, %c0_i32_0 : i32, i32
  }
  func.func @transform_6(%arg0: i32) -> (i32, i32) {
    %c0_i32 = arith.constant 0 : i32
    %c0_i32_0 = arith.constant 0 : i32
    return %arg0, %c0_i32 : i32, i32
  }
}

</mosaic_0001>

<llo_original>
// kernel: tpu_custom_call.1
$region0: #{tpu_custom_call.1}
  #allocation0 [shape = 'u32[]', space=smem, size = 0x4, offset = 0x4, fixed_abs, tag = 'smem constant byte address 0x4 - core index']
  #allocation1 [shape = 'u32[72,128]{1,0:T(1,128)}', space=vmem, size = 0x9000, scoped, tag = 'internal scratch']
  %s0 = inlined_call_operand.hbm [shape: f32[8,14], index: 0, kind: input, shape index: {}]
  %s1 = inlined_call_operand.hbm [shape: bf16[14,1024], index: 1, kind: input, shape index: {}]
  %s2 = inlined_call_operand.hbm [shape: bf16[1024,512], index: 2, kind: input, shape index: {}]
  %s3 = inlined_call_operand.hbm [shape: f32[1,512], index: 3, kind: input, shape index: {}]
  %s4 = inlined_call_operand.hbm [shape: bf16[512,128], index: 4, kind: input, shape index: {}]
  %s5 = inlined_call_operand.vmem [shape: f32[1,128], index: 5, kind: input, shape index: {}]
  %s6 = inlined_call_operand.hbm [shape: f32[8,128], index: 6, kind: output, shape index: {}]
  %s7 = sld [smem:[#allocation0]]
  $region54: #{tpu_custom_call.1} parent=0
    _
  %s9 = ssub.s32 1, %s7
  %s10 = scalar_select 0, %s9, %s7
  $region1: #{tpu_custom_call.1} parent=0
    #allocation2 [shape = 'u8[4096]{0}', space=vmem, size = 0x1000, scoped, tag = 'input window, operand 0, single buffered']
    #allocation3 [shape = 's32[1]{0}', space=sflag, size = 0x4, scoped, tag = 'scoped memory for tpu_custom_call.1']
    #allocation4 [shape = 's32[1]{0}', space=sflag, size = 0x4, scoped, tag = 'scoped memory for tpu_custom_call.1']
    #allocation5 [shape = 'u8[32768]{0}', space=vmem, size = 0x8000, scoped, tag = 'input window, operand 1, single buffered']
    #allocation6 [shape = 's32[1]{0}', space=sflag, size = 0x4, scoped, tag = 'scoped memory for tpu_custom_call.1']
    #allocation7 [shape = 'u8[1048576]{0}', space=vmem, size = 0x100000, scoped, tag = 'input window, operand 2, single buffered']
    #allocation8 [shape = 'u8[2048]{0}', space=vmem, size = 0x800, scoped, tag = 'input window, operand 3, single buffered']
    #allocation9 [shape = 's32[1]{0}', space=sflag, size = 0x4, scoped, tag = 'scoped memory for tpu_custom_call.1']
    #allocation10 [shape = 'u8[131072]{0}', space=vmem, size = 0x20000, scoped, tag = 'input window, operand 4, single buffered']
    #allocation11 [shape = 'u8[4096]{0}', space=vmem, size = 0x1000, scoped, tag = 'output window, operand 0, single buffered']
    %11 = vsyncpa [#allocation3], 0
    %12 = vsyncpa [#allocation6], 0
    %13 = vsyncpa [#allocation9], 0
    %14 = vsyncpa [#allocation4], 0
    // Predicated region
    $region2: #{tpu_custom_call.1} parent=1 // pred_check
      _
    $region3: #{tpu_custom_call.1} parent=1 // pred_check_branch
      %16 = sbr.rel (0) target = $region5
    $region4: #{tpu_custom_call.1} parent=1 // pred_region
      %18 = vsyncadd [#allocation3], 0
      %s20 = sshll.u32 %s0, 4
      %s21 = int_to_ptr.hbm [resolvable:$true] %s20
      %s22 = sshll.u32 [#allocation2], 4
      %s23 = int_to_ptr.vmem [resolvable:$true] %s22
      %25 = dma.hbm_to_vmem [thread:$0]  %s21, 128, %s23, [#allocation3]
    $region5: #{tpu_custom_call.1} parent=1 // pred_fallthru
      _
    // Predicated region
    $region6: #{tpu_custom_call.1} parent=1 // pred_check
      _
    $region7: #{tpu_custom_call.1} parent=1 // pred_check_branch
      %27 = sbr.rel (0) target = $region9
    $region8: #{tpu_custom_call.1} parent=1 // pred_region
      %29 = vsyncadd [#allocation6], 0
      %s30 = sshll.u32 %s1, 4
      %s31 = int_to_ptr.hbm [resolvable:$true] %s30
      %s32 = sshll.u32 [#allocation5], 4
      %s33 = int_to_ptr.vmem [resolvable:$true] %s32
      %38 = dma.hbm_to_vmem [thread:$0]  %s31, 1024, %s33, [#allocation6], 512, 512, 32
    $region9: #{tpu_custom_call.1} parent=1 // pred_fallthru
      _
    // Predicated region
    $region10: #{tpu_custom_call.1} parent=1 // pred_check
      _
    $region11: #{tpu_custom_call.1} parent=1 // pred_check_branch
      %40 = sbr.rel (0) target = $region13
    $region12: #{tpu_custom_call.1} parent=1 // pred_region
      %42 = vsyncadd [#allocation6], 0
      %s43 = sshll.u32 %s2, 4
      %s44 = int_to_ptr.hbm [resolvable:$true] %s43
      %s45 = sshll.u32 [#allocation7], 4
      %s46 = int_to_ptr.vmem [resolvable:$true] %s45
      %51 = dma.hbm_to_vmem [thread:$0]  %s44, 32768, %s46, [#allocation6], 256, 256, 16
    $region13: #{tpu_custom_call.1} parent=1 // pred_fallthru
      _
    // Predicated region
    $region14: #{tpu_custom_call.1} parent=1 // pred_check
      _
    $region15: #{tpu_custom_call.1} parent=1 // pred_check_branch
      %53 = sbr.rel (0) target = $region17
    $region16: #{tpu_custom_call.1} parent=1 // pred_region
      %55 = vsyncadd [#allocation9], 0
      %s57 = sshll.u32 %s3, 4
      %s58 = int_to_ptr.hbm [resolvable:$true] %s57
      %s59 = sshll.u32 [#allocation8], 4
      %s60 = int_to_ptr.vmem [resolvable:$true] %s59
      %62 = dma.hbm_to_vmem [thread:$0]  %s58, 64, %s60, [#allocation9]
    $region17: #{tpu_custom_call.1} parent=1 // pred_fallthru
      _
    // Predicated region
    $region18: #{tpu_custom_call.1} parent=1 // pred_check
      _
    $region19: #{tpu_custom_call.1} parent=1 // pred_check_branch
      %64 = sbr.rel (0) target = $region21
    $region20: #{tpu_custom_call.1} parent=1 // pred_region
      %66 = vsyncadd [#allocation9], 0
      %s67 = sshll.u32 %s4, 4
      %s68 = int_to_ptr.hbm [resolvable:$true] %s67
      %s69 = sshll.u32 [#allocation10], 4
      %s70 = int_to_ptr.vmem [resolvable:$true] %s69
      %75 = dma.hbm_to_vmem [thread:$0]  %s68, 4096, %s70, [#allocation9], 64, 64, 4
    $region21: #{tpu_custom_call.1} parent=1 // pred_fallthru
      _
    // Predicated region
    $region22: #{tpu_custom_call.1} parent=1 // pred_check
      _
    $region23: #{tpu_custom_call.1} parent=1 // pred_check_branch
      %77 = sbr.rel (0) target = $region25
    $region24: #{tpu_custom_call.1} parent=1 // pred_region
      _
    $region25: #{tpu_custom_call.1} parent=1 // pred_fallthru
      _
    // Predicated region
    $region26: #{tpu_custom_call.1} parent=1 // pred_check
      _
    $region27: #{tpu_custom_call.1} parent=1 // pred_check_branch
      %79 = sbr.rel (0) target = $region29
    $region28: #{tpu_custom_call.1} parent=1 // pred_region
      %81 = dma.done [#allocation3], 128
    $region29: #{tpu_custom_call.1} parent=1 // pred_fallthru
      _
    // Predicated region
    $region30: #{tpu_custom_call.1} parent=1 // pred_check
      _
    $region31: #{tpu_custom_call.1} parent=1 // pred_check_branch
      %83 = sbr.rel (0) target = $region33
    $region32: #{tpu_custom_call.1} parent=1 // pred_region
      %85 = dma.done [#allocation6], 1024
    $region33: #{tpu_custom_call.1} parent=1 // pred_fallthru
      _
    // Predicated region
    $region34: #{tpu_custom_call.1} parent=1 // pred_check
      _
    $region35: #{tpu_custom_call.1} parent=1 // pred_check_branch
      %87 = sbr.rel (0) target = $region37
    $region36: #{tpu_custom_call.1} parent=1 // pred_region
      %89 = dma.done [#allocation6], 32768
    $region37: #{tpu_custom_call.1} parent=1 // pred_fallthru
      _
    // Predicated region
    $region38: #{tpu_custom_call.1} parent=1 // pred_check
      _
    $region39: #{tpu_custom_call.1} parent=1 // pred_check_branch
      %91 = sbr.rel (0) target = $region41
    $region40: #{tpu_custom_call.1} parent=1 // pred_region
      %93 = dma.done [#allocation9], 64
    $region41: #{tpu_custom_call.1} parent=1 // pred_fallthru
      _
    // Predicated region
    $region42: #{tpu_custom_call.1} parent=1 // pred_check
      _
    $region43: #{tpu_custom_call.1} parent=1 // pred_check_branch
      %95 = sbr.rel (0) target = $region45
    $region44: #{tpu_custom_call.1} parent=1 // pred_region
      %97 = dma.done [#allocation9], 4096
    $region45: #{tpu_custom_call.1} parent=1 // pred_fallthru
      _
    %v99 = vld [vmem:[#allocation2] sm:$0xff]
    %v100 = vpack.c.bf16 %v99, %v99
    %v101 = vld [vmem:[#allocation5] sm:$0xff]
    %v102 = vld [vmem:[#allocation5 + $0x8] sm:$0xff]
    %v103 = vld [vmem:[#allocation5 + $0x10] sm:$0xff]
    %v104 = vld [vmem:[#allocation5 + $0x18] sm:$0xff]
    %v105 = vld [vmem:[#allocation5 + $0x20] sm:$0x77]
    %v106 = vld [vmem:[#allocation5 + $0x28] sm:$0x77]
    %v107 = vld [vmem:[#allocation5 + $0x30] sm:$0x77]
    %v108 = vld [vmem:[#allocation5 + $0x38] sm:$0x77]
    %v117 = vunpack.c.l.b16 %v101
    %v118 = vunpack.c.h.b16 %v101
    %v119 = vunpack.c.l.b16 %v102
    %v120 = vunpack.c.h.b16 %v102
    %v121 = vunpack.c.l.b16 %v103
    %v122 = vunpack.c.h.b16 %v103
    %v123 = vunpack.c.l.b16 %v104
    %v124 = vunpack.c.h.b16 %v104
    %v125 = vunpack.c.l.b16 %v105
    %v126 = vunpack.c.h.b16 %v105
    %v127 = vunpack.c.l.b16 %v106
    %v128 = vunpack.c.h.b16 %v106
    %v129 = vunpack.c.l.b16 %v107
    %v130 = vunpack.c.h.b16 %v107
    %v131 = vunpack.c.l.b16 %v108
    %v132 = vunpack.c.h.b16 %v108
    %v133 = vpack.c.b16 %v125, %v117
    %v134 = vpack.c.b16 %v126, %v118
    %v135 = vpack.c.b16 %v127, %v119
    %v136 = vpack.c.b16 %v128, %v120
    %v137 = vpack.c.b16 %v129, %v121
    %v138 = vpack.c.b16 %v130, %v122
    %v139 = vpack.c.b16 %v131, %v123
    %v140 = vpack.c.b16 %v132, %v124
    %vm141 = vcmask 113664
    %v143 = vsel %vm141, %v100, 0
    %vm145 = vcmask 1046528
    %v147 = vsel %vm145, %v133, 0
    %v150 = vsel %vm145, %v134, 0
    %v153 = vsel %vm145, %v135, 0
    %v156 = vsel %vm145, %v136, 0
    %v159 = vsel %vm145, %v137, 0
    %v162 = vsel %vm145, %v138, 0
    %v165 = vsel %vm145, %v139, 0
    %v168 = vsel %vm145, %v140, 0
    %170 = vmatpush.bf16.msra.mxu0 0
    %171 = vmatpush.bf16.msra.mxu0 0
    %172 = vmatpush.bf16.msra.mxu0 0
    %173 = vmatpush.bf16.msra.mxu0 0
    %174 = vmatpush.bf16.msra.mxu0 0
    %175 = vmatpush.bf16.msra.mxu0 0
    %176 = vmatpush.bf16.msra.mxu0 0
    %177 = vmatpush.bf16.msra.mxu0 %v147
    %178 = vmatmul.bf16.gmra.mxu0 %v143
    %v179 = vpop.f32.mrf.mxu0
    %v180 = vadd.f32 0.0, %v179
    %v181 = vpop.f32.mrf.mxu0
    %182 = vdwg.mxu0
    %183 = vmatpush.bf16.msra.mxu0 0
    %184 = vmatpush.bf16.msra.mxu0 0
    %185 = vmatpush.bf16.msra.mxu0 0
    %186 = vmatpush.bf16.msra.mxu0 0
    %187 = vmatpush.bf16.msra.mxu0 0
    %188 = vmatpush.bf16.msra.mxu0 0
    %189 = vmatpush.bf16.msra.mxu0 0
    %190 = vmatpush.bf16.msra.mxu0 %v150
    %191 = vmatmul.bf16.gmra.mxu0 %v143
    %v192 = vpop.f32.mrf.mxu0
    %v193 = vadd.f32 0.0, %v192
    %v194 = vpop.f32.mrf.mxu0
    %195 = vdwg.mxu0
    %196 = vmatpush.bf16.msra.mxu0 0
    %197 = vmatpush.bf16.msra.mxu0 0
    %198 = vmatpush.bf16.msra.mxu0 0
    %199 = vmatpush.bf16.msra.mxu0 0
    %200 = vmatpush.bf16.msra.mxu0 0
    %201 = vmatpush.bf16.msra.mxu0 0
    %202 = vmatpush.bf16.msra.mxu0 0
    %203 = vmatpush.bf16.msra.mxu0 %v153
    %204 = vmatmul.bf16.gmra.mxu0 %v143
    %v205 = vpop.f32.mrf.mxu0
    %v206 = vadd.f32 0.0, %v205
    %v207 = vpop.f32.mrf.mxu0
    %208 = vdwg.mxu0
    %209 = vmatpush.bf16.msra.mxu0 0
    %210 = vmatpush.bf16.msra.mxu0 0
    %211 = vmatpush.bf16.msra.mxu0 0
    %212 = vmatpush.bf16.msra.mxu0 0
    %213 = vmatpush.bf16.msra.mxu0 0
    %214 = vmatpush.bf16.msra.mxu0 0
    %215 = vmatpush.bf16.msra.mxu0 0
    %216 = vmatpush.bf16.msra.mxu0 %v156
    %217 = vmatmul.bf16.gmra.mxu0 %v143
    %v218 = vpop.f32.mrf.mxu0
    %v219 = vadd.f32 0.0, %v218
    %v220 = vpop.f32.mrf.mxu0
    %221 = vdwg.mxu0
    %222 = vmatpush.bf16.msra.mxu0 0
    %223 = vmatpush.bf16.msra.mxu0 0
    %224 = vmatpush.bf16.msra.mxu0 0
    %225 = vmatpush.bf16.msra.mxu0 0
    %226 = vmatpush.bf16.msra.mxu0 0
    %227 = vmatpush.bf16.msra.mxu0 0
    %228 = vmatpush.bf16.msra.mxu0 0
    %229 = vmatpush.bf16.msra.mxu0 %v159
    %230 = vmatmul.bf16.gmra.mxu0 %v143
    %v231 = vpop.f32.mrf.mxu0
    %v232 = vadd.f32 0.0, %v231
    %v233 = vpop.f32.mrf.mxu0
    %234 = vdwg.mxu0
    %235 = vmatpush.bf16.msra.mxu0 0
    %236 = vmatpush.bf16.msra.mxu0 0
    %237 = vmatpush.bf16.msra.mxu0 0
    %238 = vmatpush.bf16.msra.mxu0 0
    %239 = vmatpush.bf16.msra.mxu0 0
    %240 = vmatpush.bf16.msra.mxu0 0
    %241 = vmatpush.bf16.msra.mxu0 0
    %242 = vmatpush.bf16.msra.mxu0 %v162
    %243 = vmatmul.bf16.gmra.mxu0 %v143
    %v244 = vpop.f32.mrf.mxu0
    %v245 = vadd.f32 0.0, %v244
    %v246 = vpop.f32.mrf.mxu0
    %247 = vdwg.mxu0
    %248 = vmatpush.bf16.msra.mxu0 0
    %249 = vmatpush.bf16.msra.mxu0 0
    %250 = vmatpush.bf16.msra.mxu0 0
    %251 = vmatpush.bf16.msra.mxu0 0
    %252 = vmatpush.bf16.msra.mxu0 0
    %253 = vmatpush.bf16.msra.mxu0 0
    %254 = vmatpush.bf16.msra.mxu0 0
    %255 = vmatpush.bf16.msra.mxu0 %v165
    %256 = vmatmul.bf16.gmra.mxu0 %v143
    %v257 = vpop.f32.mrf.mxu0
    %v258 = vadd.f32 0.0, %v257
    %v259 = vpop.f32.mrf.mxu0
    %260 = vdwg.mxu0
    %261 = vmatpush.bf16.msra.mxu0 0
    %262 = vmatpush.bf16.msra.mxu0 0
    %263 = vmatpush.bf16.msra.mxu0 0
    %264 = vmatpush.bf16.msra.mxu0 0
    %265 = vmatpush.bf16.msra.mxu0 0
    %266 = vmatpush.bf16.msra.mxu0 0
    %267 = vmatpush.bf16.msra.mxu0 0
    %268 = vmatpush.bf16.msra.mxu0 %v168
    %269 = vmatmul.bf16.gmra.mxu0 %v143
    %v270 = vpop.f32.mrf.mxu0
    %v271 = vadd.f32 0.0, %v270
    %v272 = vpop.f32.mrf.mxu0
    %273 = vdwg.mxu0
    %v274 = vpack.c.bf16 %v193, %v180
    %v275 = vpack.c.bf16 %v219, %v206
    %v276 = vpack.c.bf16 %v245, %v232
    %v277 = vpack.c.bf16 %v271, %v258
    %v278 = vunpack.c.l.bf16 %v274
    %v279 = vunpack.c.h.bf16 %v274
    %v280 = vunpack.c.l.bf16 %v275
    %v281 = vunpack.c.h.bf16 %v275
    %v282 = vunpack.c.l.bf16 %v276
    %v283 = vunpack.c.h.bf16 %v276
    %v284 = vunpack.c.l.bf16 %v277
    %v285 = vunpack.c.h.bf16 %v277
    %v286 = vmax.f32 %v278, 0.0
    %v287 = vmax.f32 %v279, 0.0
    %v288 = vmax.f32 %v280, 0.0
    %v289 = vmax.f32 %v281, 0.0
    %v290 = vmax.f32 %v282, 0.0
    %v291 = vmax.f32 %v283, 0.0
    %v292 = vmax.f32 %v284, 0.0
    %v293 = vmax.f32 %v285, 0.0
    %v294 = vpack.c.bf16 %v286, %v286
    %v295 = vpack.c.bf16 %v287, %v287
    %v296 = vpack.c.bf16 %v288, %v288
    %v297 = vpack.c.bf16 %v289, %v289
    %v298 = vpack.c.bf16 %v290, %v290
    %v299 = vpack.c.bf16 %v291, %v291
    %v300 = vpack.c.bf16 %v292, %v292
    %v301 = vpack.c.bf16 %v293, %v293
    %v302 = vld [vmem:[#allocation7] sm:$0xff]
    %v303 = vld [vmem:[#allocation7 + $0x8] sm:$0xff]
    %v304 = vld [vmem:[#allocation7 + $0x10] sm:$0xff]
    %v305 = vld [vmem:[#allocation7 + $0x18] sm:$0xff]
    %v306 = vld [vmem:[#allocation7 + $0x20] sm:$0xff]
    %v307 = vld [vmem:[#allocation7 + $0x28] sm:$0xff]
    %v308 = vld [vmem:[#allocation7 + $0x30] sm:$0xff]
    %v309 = vld [vmem:[#allocation7 + $0x38] sm:$0xff]
    %v310 = vld [vmem:[#allocation7 + $0x40] sm:$0xff]
    %v311 = vld [vmem:[#allocation7 + $0x48] sm:$0xff]
    %v312 = vld [vmem:[#allocation7 + $0x50] sm:$0xff]
    %v313 = vld [vmem:[#allocation7 + $0x58] sm:$0xff]
    %v314 = vld [vmem:[#allocation7 + $0x60] sm:$0xff]
    %v315 = vld [vmem:[#allocation7 + $0x68] sm:$0xff]
    %v316 = vld [vmem:[#allocation7 + $0x70] sm:$0xff]
    %v317 = vld [vmem:[#allocation7 + $0x78] sm:$0xff]
    %v318 = vld [vmem:[#allocation7 + $0x80] sm:$0xff]
    %v319 = vld [vmem:[#allocation7 + $0x88] sm:$0xff]
    %v320 = vld [vmem:[#allocation7 + $0x90] sm:$0xff]
    %v321 = vld [vmem:[#allocation7 + $0x98] sm:$0xff]
    %v322 = vld [vmem:[#allocation7 + $0xa0] sm:$0xff]
    %v323 = vld [vmem:[#allocation7 + $0xa8] sm:$0xff]
    %v324 = vld [vmem:[#allocation7 + $0xb0] sm:$0xff]
    %v325 = vld [vmem:[#allocation7 + $0xb8] sm:$0xff]
    %v326 = vld [vmem:[#allocation7 + $0xc0] sm:$0xff]
    %v327 = vld [vmem:[#allocation7 + $0xc8] sm:$0xff]
    %v328 = vld [vmem:[#allocation7 + $0xd0] sm:$0xff]
    %v329 = vld [vmem:[#allocation7 + $0xd8] sm:$0xff]
    %v330 = vld [vmem:[#allocation7 + $0xe0] sm:$0xff]
    %v331 = vld [vmem:[#allocation7 + $0xe8] sm:$0xff]
    %v332 = vld [vmem:[#allocation7 + $0xf0] sm:$0xff]
    %v333 = vld [vmem:[#allocation7 + $0xf8] sm:$0xff]
    %v334 = vld [vmem:[#allocation7 + $0x100] sm:$0xff]
    %v335 = vld [vmem:[#allocation7 + $0x108] sm:$0xff]
    %v336 = vld [vmem:[#allocation7 + $0x110] sm:$0xff]
    %v337 = vld [vmem:[#allocation7 + $0x118] sm:$0xff]
    %v338 = vld [vmem:[#allocation7 + $0x120] sm:$0xff]
    %v339 = vld [vmem:[#allocation7 + $0x128] sm:$0xff]
    %v340 = vld [vmem:[#allocation7 + $0x130] sm:$0xff]
    %v341 = vld [vmem:[#allocation7 + $0x138] sm:$0xff]
    %v342 = vld [vmem:[#allocation7 + $0x140] sm:$0xff]
    %v343 = vld [vmem:[#allocation7 + $0x148] sm:$0xff]
    %v344 = vld [vmem:[#allocation7 + $0x150] sm:$0xff]
    %v345 = vld [vmem:[#allocation7 + $0x158] sm:$0xff]
    %v346 = vld [vmem:[#allocation7 + $0x160] sm:$0xff]
    %v347 = vld [vmem:[#allocation7 + $0x168] sm:$0xff]
    %v348 = vld [vmem:[#allocation7 + $0x170] sm:$0xff]
    %v349 = vld [vmem:[#allocation7 + $0x178] sm:$0xff]
    %v350 = vld [vmem:[#allocation7 + $0x180] sm:$0xff]
    %v351 = vld [vmem:[#allocation7 + $0x188] sm:$0xff]
    %v352 = vld [vmem:[#allocation7 + $0x190] sm:$0xff]
    %v353 = vld [vmem:[#allocation7 + $0x198] sm:$0xff]
    %v354 = vld [vmem:[#allocation7 + $0x1a0] sm:$0xff]
    %v355 = vld [vmem:[#allocation7 + $0x1a8] sm:$0xff]
    %v356 = vld [vmem:[#allocation7 + $0x1b0] sm:$0xff]
    %v357 = vld [vmem:[#allocation7 + $0x1b8] sm:$0xff]
    %v358 = vld [vmem:[#allocation7 + $0x1c0] sm:$0xff]
    %v359 = vld [vmem:[#allocation7 + $0x1c8] sm:$0xff]
    %v360 = vld [vmem:[#allocation7 + $0x1d0] sm:$0xff]
    %v361 = vld [vmem:[#allocation7 + $0x1d8] sm:$0xff]
    %v362 = vld [vmem:[#allocation7 + $0x1e0] sm:$0xff]
    %v363 = vld [vmem:[#allocation7 + $0x1e8] sm:$0xff]
    %v364 = vld [vmem:[#allocation7 + $0x1f0] sm:$0xff]
    %v365 = vld [vmem:[#allocation7 + $0x1f8] sm:$0xff]
    %v366 = vld [vmem:[#allocation7 + $0x200] sm:$0xff]
    %v367 = vld [vmem:[#allocation7 + $0x208] sm:$0xff]
    %v368 = vld [vmem:[#allocation7 + $0x210] sm:$0xff]
    %v369 = vld [vmem:[#allocation7 + $0x218] sm:$0xff]
    %v370 = vld [vmem:[#allocation7 + $0x220] sm:$0xff]
    %v371 = vld [vmem:[#allocation7 + $0x228] sm:$0xff]
    %v372 = vld [vmem:[#allocation7 + $0x230] sm:$0xff]
    %v373 = vld [vmem:[#allocation7 + $0x238] sm:$0xff]
    %v374 = vld [vmem:[#allocation7 + $0x240] sm:$0xff]
    %v375 = vld [vmem:[#allocation7 + $0x248] sm:$0xff]
    %v376 = vld [vmem:[#allocation7 + $0x250] sm:$0xff]
    %v377 = vld [vmem:[#allocation7 + $0x258] sm:$0xff]
    %v378 = vld [vmem:[#allocation7 + $0x260] sm:$0xff]
    %v379 = vld [vmem:[#allocation7 + $0x268] sm:$0xff]
    %v380 = vld [vmem:[#allocation7 + $0x270] sm:$0xff]
    %v381 = vld [vmem:[#allocation7 + $0x278] sm:$0xff]
    %v382 = vld [vmem:[#allocation7 + $0x280] sm:$0xff]
    %v383 = vld [vmem:[#allocation7 + $0x288] sm:$0xff]
    %v384 = vld [vmem:[#allocation7 + $0x290] sm:$0xff]
    %v385 = vld [vmem:[#allocation7 + $0x298] sm:$0xff]
    %v386 = vld [vmem:[#allocation7 + $0x2a0] sm:$0xff]
    %v387 = vld [vmem:[#allocation7 + $0x2a8] sm:$0xff]
    %v388 = vld [vmem:[#allocation7 + $0x2b0] sm:$0xff]
    %v389 = vld [vmem:[#allocation7 + $0x2b8] sm:$0xff]
    %v390 = vld [vmem:[#allocation7 + $0x2c0] sm:$0xff]
    %v391 = vld [vmem:[#allocation7 + $0x2c8] sm:$0xff]
    %v392 = vld [vmem:[#allocation7 + $0x2d0] sm:$0xff]
    %v393 = vld [vmem:[#allocation7 + $0x2d8] sm:$0xff]
    %v394 = vld [vmem:[#allocation7 + $0x2e0] sm:$0xff]
    %v395 = vld [vmem:[#allocation7 + $0x2e8] sm:$0xff]
    %v396 = vld [vmem:[#allocation7 + $0x2f0] sm:$0xff]
    %v397 = vld [vmem:[#allocation7 + $0x2f8] sm:$0xff]
    %v398 = vld [vmem:[#allocation7 + $0x300] sm:$0xff]
    %v399 = vld [vmem:[#allocation7 + $0x308] sm:$0xff]
    %v400 = vld [vmem:[#allocation7 + $0x310] sm:$0xff]
    %v401 = vld [vmem:[#allocation7 + $0x318] sm:$0xff]
    %v402 = vld [vmem:[#allocation7 + $0x320] sm:$0xff]
    %v403 = vld [vmem:[#allocation7 + $0x328] sm:$0xff]
    %v404 = vld [vmem:[#allocation7 + $0x330] sm:$0xff]
    %v405 = vld [vmem:[#allocation7 + $0x338] sm:$0xff]
    %v406 = vld [vmem:[#allocation7 + $0x340] sm:$0xff]
    %v407 = vld [vmem:[#allocation7 + $0x348] sm:$0xff]
    %v408 = vld [vmem:[#allocation7 + $0x350] sm:$0xff]
    %v409 = vld [vmem:[#allocation7 + $0x358] sm:$0xff]
    %v410 = vld [vmem:[#allocation7 + $0x360] sm:$0xff]
    %v411 = vld [vmem:[#allocation7 + $0x368] sm:$0xff]
    %v412 = vld [vmem:[#allocation7 + $0x370] sm:$0xff]
    %v413 = vld [vmem:[#allocation7 + $0x378] sm:$0xff]
    %v414 = vld [vmem:[#allocation7 + $0x380] sm:$0xff]
    %v415 = vld [vmem:[#allocation7 + $0x388] sm:$0xff]
    %v416 = vld [vmem:[#allocation7 + $0x390] sm:$0xff]
    %v417 = vld [vmem:[#allocation7 + $0x398] sm:$0xff]
    %v418 = vld [vmem:[#allocation7 + $0x3a0] sm:$0xff]
    %v419 = vld [vmem:[#allocation7 + $0x3a8] sm:$0xff]
    %v420 = vld [vmem:[#allocation7 + $0x3b0] sm:$0xff]
    %v421 = vld [vmem:[#allocation7 + $0x3b8] sm:$0xff]
    %v422 = vld [vmem:[#allocation7 + $0x3c0] sm:$0xff]
    %v423 = vld [vmem:[#allocation7 + $0x3c8] sm:$0xff]
    %v424 = vld [vmem:[#allocation7 + $0x3d0] sm:$0xff]
    %v425 = vld [vmem:[#allocation7 + $0x3d8] sm:$0xff]
    %v426 = vld [vmem:[#allocation7 + $0x3e0] sm:$0xff]
    %v427 = vld [vmem:[#allocation7 + $0x3e8] sm:$0xff]
    %v428 = vld [vmem:[#allocation7 + $0x3f0] sm:$0xff]
    %v429 = vld [vmem:[#allocation7 + $0x3f8] sm:$0xff]
    %v430 = vld [vmem:[#allocation7 + $0x400] sm:$0xff]
    %v431 = vld [vmem:[#allocation7 + $0x408] sm:$0xff]
    %v432 = vld [vmem:[#allocation7 + $0x410] sm:$0xff]
    %v433 = vld [vmem:[#allocation7 + $0x418] sm:$0xff]
    %v434 = vld [vmem:[#allocation7 + $0x420] sm:$0xff]
    %v435 = vld [vmem:[#allocation7 + $0x428] sm:$0xff]
    %v436 = vld [vmem:[#allocation7 + $0x430] sm:$0xff]
    %v437 = vld [vmem:[#allocation7 + $0x438] sm:$0xff]
    %v438 = vld [vmem:[#allocation7 + $0x440] sm:$0xff]
    %v439 = vld [vmem:[#allocation7 + $0x448] sm:$0xff]
    %v440 = vld [vmem:[#allocation7 + $0x450] sm:$0xff]
    %v441 = vld [vmem:[#allocation7 + $0x458] sm:$0xff]
    %v442 = vld [vmem:[#allocation7 + $0x460] sm:$0xff]
    %v443 = vld [vmem:[#allocation7 + $0x468] sm:$0xff]
    %v444 = vld [vmem:[#allocation7 + $0x470] sm:$0xff]
    %v445 = vld [vmem:[#allocation7 + $0x478] sm:$0xff]
    %v446 = vld [vmem:[#allocation7 + $0x480] sm:$0xff]
    %v447 = vld [vmem:[#allocation7 + $0x488] sm:$0xff]
    %v448 = vld [vmem:[#allocation7 + $0x490] sm:$0xff]
    %v449 = vld [vmem:[#allocation7 + $0x498] sm:$0xff]
    %v450 = vld [vmem:[#allocation7 + $0x4a0] sm:$0xff]
    %v451 = vld [vmem:[#allocation7 + $0x4a8] sm:$0xff]
    %v452 = vld [vmem:[#allocation7 + $0x4b0] sm:$0xff]
    %v453 = vld [vmem:[#allocation7 + $0x4b8] sm:$0xff]
    %v454 = vld [vmem:[#allocation7 + $0x4c0] sm:$0xff]
    %v455 = vld [vmem:[#allocation7 + $0x4c8] sm:$0xff]
    %v456 = vld [vmem:[#allocation7 + $0x4d0] sm:$0xff]
    %v457 = vld [vmem:[#allocation7 + $0x4d8] sm:$0xff]
    %v458 = vld [vmem:[#allocation7 + $0x4e0] sm:$0xff]
    %v459 = vld [vmem:[#allocation7 + $0x4e8] sm:$0xff]
    %v460 = vld [vmem:[#allocation7 + $0x4f0] sm:$0xff]
    %v461 = vld [vmem:[#allocation7 + $0x4f8] sm:$0xff]
    %v462 = vld [vmem:[#allocation7 + $0x500] sm:$0xff]
    %v463 = vld [vmem:[#allocation7 + $0x508] sm:$0xff]
    %v464 = vld [vmem:[#allocation7 + $0x510] sm:$0xff]
    %v465 = vld [vmem:[#allocation7 + $0x518] sm:$0xff]
    %v466 = vld [vmem:[#allocation7 + $0x520] sm:$0xff]
    %v467 = vld [vmem:[#allocation7 + $0x528] sm:$0xff]
    %v468 = vld [vmem:[#allocation7 + $0x530] sm:$0xff]
    %v469 = vld [vmem:[#allocation7 + $0x538] sm:$0xff]
    %v470 = vld [vmem:[#allocation7 + $0x540] sm:$0xff]
    %v471 = vld [vmem:[#allocation7 + $0x548] sm:$0xff]
    %v472 = vld [vmem:[#allocation7 + $0x550] sm:$0xff]
    %v473 = vld [vmem:[#allocation7 + $0x558] sm:$0xff]
    %v474 = vld [vmem:[#allocation7 + $0x560] sm:$0xff]
    %v475 = vld [vmem:[#allocation7 + $0x568] sm:$0xff]
    %v476 = vld [vmem:[#allocation7 + $0x570] sm:$0xff]
    %v477 = vld [vmem:[#allocation7 + $0x578] sm:$0xff]
    %v478 = vld [vmem:[#allocation7 + $0x580] sm:$0xff]
    %v479 = vld [vmem:[#allocation7 + $0x588] sm:$0xff]
    %v480 = vld [vmem:[#allocation7 + $0x590] sm:$0xff]
    %v481 = vld [vmem:[#allocation7 + $0x598] sm:$0xff]
    %v482 = vld [vmem:[#allocation7 + $0x5a0] sm:$0xff]
    %v483 = vld [vmem:[#allocation7 + $0x5a8] sm:$0xff]
    %v484 = vld [vmem:[#allocation7 + $0x5b0] sm:$0xff]
    %v485 = vld [vmem:[#allocation7 + $0x5b8] sm:$0xff]
    %v486 = vld [vmem:[#allocation7 + $0x5c0] sm:$0xff]
    %v487 = vld [vmem:[#allocation7 + $0x5c8] sm:$0xff]
    %v488 = vld [vmem:[#allocation7 + $0x5d0] sm:$0xff]
    %v489 = vld [vmem:[#allocation7 + $0x5d8] sm:$0xff]
    %v490 = vld [vmem:[#allocation7 + $0x5e0] sm:$0xff]
    %v491 = vld [vmem:[#allocation7 + $0x5e8] sm:$0xff]
    %v492 = vld [vmem:[#allocation7 + $0x5f0] sm:$0xff]
    %v493 = vld [vmem:[#allocation7 + $0x5f8] sm:$0xff]
    %v494 = vld [vmem:[#allocation7 + $0x600] sm:$0xff]
    %v495 = vld [vmem:[#allocation7 + $0x608] sm:$0xff]
    %v496 = vld [vmem:[#allocation7 + $0x610] sm:$0xff]
    %v497 = vld [vmem:[#allocation7 + $0x618] sm:$0xff]
    %v498 = vld [vmem:[#allocation7 + $0x620] sm:$0xff]
    %v499 = vld [vmem:[#allocation7 + $0x628] sm:$0xff]
    %v500 = vld [vmem:[#allocation7 + $0x630] sm:$0xff]
    %v501 = vld [vmem:[#allocation7 + $0x638] sm:$0xff]
    %v502 = vld [vmem:[#allocation7 + $0x640] sm:$0xff]
    %v503 = vld [vmem:[#allocation7 + $0x648] sm:$0xff]
    %v504 = vld [vmem:[#allocation7 + $0x650] sm:$0xff]
    %v505 = vld [vmem:[#allocation7 + $0x658] sm:$0xff]
    %v506 = vld [vmem:[#allocation7 + $0x660] sm:$0xff]
    %v507 = vld [vmem:[#allocation7 + $0x668] sm:$0xff]
    %v508 = vld [vmem:[#allocation7 + $0x670] sm:$0xff]
    %v509 = vld [vmem:[#allocation7 + $0x678] sm:$0xff]
    %v510 = vld [vmem:[#allocation7 + $0x680] sm:$0xff]
    %v511 = vld [vmem:[#allocation7 + $0x688] sm:$0xff]
    %v512 = vld [vmem:[#allocation7 + $0x690] sm:$0xff]
    %v513 = vld [vmem:[#allocation7 + $0x698] sm:$0xff]
    %v514 = vld [vmem:[#allocation7 + $0x6a0] sm:$0xff]
    %v515 = vld [vmem:[#allocation7 + $0x6a8] sm:$0xff]
    %v516 = vld [vmem:[#allocation7 + $0x6b0] sm:$0xff]
    %v517 = vld [vmem:[#allocation7 + $0x6b8] sm:$0xff]
    %v518 = vld [vmem:[#allocation7 + $0x6c0] sm:$0xff]
    %v519 = vld [vmem:[#allocation7 + $0x6c8] sm:$0xff]
    %v520 = vld [vmem:[#allocation7 + $0x6d0] sm:$0xff]
    %v521 = vld [vmem:[#allocation7 + $0x6d8] sm:$0xff]
    %v522 = vld [vmem:[#allocation7 + $0x6e0] sm:$0xff]
    %v523 = vld [vmem:[#allocation7 + $0x6e8] sm:$0xff]
    %v524 = vld [vmem:[#allocation7 + $0x6f0] sm:$0xff]
    %v525 = vld [vmem:[#allocation7 + $0x6f8] sm:$0xff]
    %v526 = vld [vmem:[#allocation7 + $0x700] sm:$0xff]
    %v527 = vld [vmem:[#allocation7 + $0x708] sm:$0xff]
    %v528 = vld [vmem:[#allocation7 + $0x710] sm:$0xff]
    %v529 = vld [vmem:[#allocation7 + $0x718] sm:$0xff]
    %v530 = vld [vmem:[#allocation7 + $0x720] sm:$0xff]
    %v531 = vld [vmem:[#allocation7 + $0x728] sm:$0xff]
    %v532 = vld [vmem:[#allocation7 + $0x730] sm:$0xff]
    %v533 = vld [vmem:[#allocation7 + $0x738] sm:$0xff]
    %v534 = vld [vmem:[#allocation7 + $0x740] sm:$0xff]
    %v535 = vld [vmem:[#allocation7 + $0x748] sm:$0xff]
    %v536 = vld [vmem:[#allocation7 + $0x750] sm:$0xff]
    %v537 = vld [vmem:[#allocation7 + $0x758] sm:$0xff]
    %v538 = vld [vmem:[#allocation7 + $0x760] sm:$0xff]
    %v539 = vld [vmem:[#allocation7 + $0x768] sm:$0xff]
    %v540 = vld [vmem:[#allocation7 + $0x770] sm:$0xff]
    %v541 = vld [vmem:[#allocation7 + $0x778] sm:$0xff]
    %v542 = vld [vmem:[#allocation7 + $0x780] sm:$0xff]
    %v543 = vld [vmem:[#allocation7 + $0x788] sm:$0xff]
    %v544 = vld [vmem:[#allocation7 + $0x790] sm:$0xff]
    %v545 = vld [vmem:[#allocation7 + $0x798] sm:$0xff]
    %v546 = vld [vmem:[#allocation7 + $0x7a0] sm:$0xff]
    %v547 = vld [vmem:[#allocation7 + $0x7a8] sm:$0xff]
    %v548 = vld [vmem:[#allocation7 + $0x7b0] sm:$0xff]
    %v549 = vld [vmem:[#allocation7 + $0x7b8] sm:$0xff]
    %v550 = vld [vmem:[#allocation7 + $0x7c0] sm:$0xff]
    %v551 = vld [vmem:[#allocation7 + $0x7c8] sm:$0xff]
    %v552 = vld [vmem:[#allocation7 + $0x7d0] sm:$0xff]
    %v553 = vld [vmem:[#allocation7 + $0x7d8] sm:$0xff]
    %v554 = vld [vmem:[#allocation7 + $0x7e0] sm:$0xff]
    %v555 = vld [vmem:[#allocation7 + $0x7e8] sm:$0xff]
    %v556 = vld [vmem:[#allocation7 + $0x7f0] sm:$0xff]
    %v557 = vld [vmem:[#allocation7 + $0x7f8] sm:$0xff]
    %v558 = vld [vmem:[#allocation8] sm:$0xf]
    %v560 = vperm.slane %v558, 0
    %v561 = vperm.slane %v558, 1
    %v562 = vperm.slane %v558, 2
    %v563 = vperm.slane %v558, 3
    %v824 = vunpack.c.l.b16 %v302
    %v825 = vunpack.c.h.b16 %v302
    %v826 = vunpack.c.l.b16 %v303
    %v827 = vunpack.c.h.b16 %v303
    %v828 = vunpack.c.l.b16 %v304
    %v829 = vunpack.c.h.b16 %v304
    %v830 = vunpack.c.l.b16 %v305
    %v831 = vunpack.c.h.b16 %v305
    %v832 = vunpack.c.l.b16 %v306
    %v833 = vunpack.c.h.b16 %v306
    %v834 = vunpack.c.l.b16 %v307
    %v835 = vunpack.c.h.b16 %v307
    %v836 = vunpack.c.l.b16 %v308
    %v837 = vunpack.c.h.b16 %v308
    %v838 = vunpack.c.l.b16 %v309
    %v839 = vunpack.c.h.b16 %v309
    %v840 = vunpack.c.l.b16 %v310
    %v841 = vunpack.c.h.b16 %v310
    %v842 = vunpack.c.l.b16 %v311
    %v843 = vunpack.c.h.b16 %v311
    %v844 = vunpack.c.l.b16 %v312
    %v845 = vunpack.c.h.b16 %v312
    %v846 = vunpack.c.l.b16 %v313
    %v847 = vunpack.c.h.b16 %v313
    %v848 = vunpack.c.l.b16 %v314
    %v849 = vunpack.c.h.b16 %v314
    %v850 = vunpack.c.l.b16 %v315
    %v851 = vunpack.c.h.b16 %v315
    %v852 = vunpack.c.l.b16 %v316
    %v853 = vunpack.c.h.b16 %v316
    %v854 = vunpack.c.l.b16 %v317
    %v855 = vunpack.c.h.b16 %v317
    %v856 = vunpack.c.l.b16 %v318
    %v857 = vunpack.c.h.b16 %v318
    %v858 = vunpack.c.l.b16 %v319
    %v859 = vunpack.c.h.b16 %v319
    %v860 = vunpack.c.l.b16 %v320
    %v861 = vunpack.c.h.b16 %v320
    %v862 = vunpack.c.l.b16 %v321
    %v863 = vunpack.c.h.b16 %v321
    %v864 = vunpack.c.l.b16 %v322
    %v865 = vunpack.c.h.b16 %v322
    %v866 = vunpack.c.l.b16 %v323
    %v867 = vunpack.c.h.b16 %v323
    %v868 = vunpack.c.l.b16 %v324
    %v869 = vunpack.c.h.b16 %v324
    %v870 = vunpack.c.l.b16 %v325
    %v871 = vunpack.c.h.b16 %v325
    %v872 = vunpack.c.l.b16 %v326
    %v873 = vunpack.c.h.b16 %v326
    %v874 = vunpack.c.l.b16 %v327
    %v875 = vunpack.c.h.b16 %v327
    %v876 = vunpack.c.l.b16 %v328
    %v877 = vunpack.c.h.b16 %v328
    %v878 = vunpack.c.l.b16 %v329
    %v879 = vunpack.c.h.b16 %v329
    %v880 = vunpack.c.l.b16 %v330
    %v881 = vunpack.c.h.b16 %v330
    %v882 = vunpack.c.l.b16 %v331
    %v883 = vunpack.c.h.b16 %v331
    %v884 = vunpack.c.l.b16 %v332
    %v885 = vunpack.c.h.b16 %v332
    %v886 = vunpack.c.l.b16 %v333
    %v887 = vunpack.c.h.b16 %v333
    %v888 = vunpack.c.l.b16 %v334
    %v889 = vunpack.c.h.b16 %v334
    %v890 = vunpack.c.l.b16 %v335
    %v891 = vunpack.c.h.b16 %v335
    %v892 = vunpack.c.l.b16 %v336
    %v893 = vunpack.c.h.b16 %v336
    %v894 = vunpack.c.l.b16 %v337
    %v895 = vunpack.c.h.b16 %v337
    %v896 = vunpack.c.l.b16 %v338
    %v897 = vunpack.c.h.b16 %v338
    %v898 = vunpack.c.l.b16 %v339
    %v899 = vunpack.c.h.b16 %v339
    %v900 = vunpack.c.l.b16 %v340
    %v901 = vunpack.c.h.b16 %v340
    %v902 = vunpack.c.l.b16 %v341
    %v903 = vunpack.c.h.b16 %v341
    %v904 = vunpack.c.l.b16 %v342
    %v905 = vunpack.c.h.b16 %v342
    %v906 = vunpack.c.l.b16 %v343
    %v907 = vunpack.c.h.b16 %v343
    %v908 = vunpack.c.l.b16 %v344
    %v909 = vunpack.c.h.b16 %v344
    %v910 = vunpack.c.l.b16 %v345
    %v911 = vunpack.c.h.b16 %v345
    %v912 = vunpack.c.l.b16 %v346
    %v913 = vunpack.c.h.b16 %v346
    %v914 = vunpack.c.l.b16 %v347
    %v915 = vunpack.c.h.b16 %v347
    %v916 = vunpack.c.l.b16 %v348
    %v917 = vunpack.c.h.b16 %v348
    %v918 = vunpack.c.l.b16 %v349
    %v919 = vunpack.c.h.b16 %v349
    %v920 = vunpack.c.l.b16 %v350
    %v921 = vunpack.c.h.b16 %v350
    %v922 = vunpack.c.l.b16 %v351
    %v923 = vunpack.c.h.b16 %v351
    %v924 = vunpack.c.l.b16 %v352
    %v925 = vunpack.c.h.b16 %v352
    %v926 = vunpack.c.l.b16 %v353
    %v927 = vunpack.c.h.b16 %v353
    %v928 = vunpack.c.l.b16 %v354
    %v929 = vunpack.c.h.b16 %v354
    %v930 = vunpack.c.l.b16 %v355
    %v931 = vunpack.c.h.b16 %v355
    %v932 = vunpack.c.l.b16 %v356
    %v933 = vunpack.c.h.b16 %v356
    %v934 = vunpack.c.l.b16 %v357
    %v935 = vunpack.c.h.b16 %v357
    %v936 = vunpack.c.l.b16 %v358
    %v937 = vunpack.c.h.b16 %v358
    %v938 = vunpack.c.l.b16 %v359
    %v939 = vunpack.c.h.b16 %v359
    %v940 = vunpack.c.l.b16 %v360
    %v941 = vunpack.c.h.b16 %v360
    %v942 = vunpack.c.l.b16 %v361
    %v943 = vunpack.c.h.b16 %v361
    %v944 = vunpack.c.l.b16 %v362
    %v945 = vunpack.c.h.b16 %v362
    %v946 = vunpack.c.l.b16 %v363
    %v947 = vunpack.c.h.b16 %v363
    %v948 = vunpack.c.l.b16 %v364
    %v949 = vunpack.c.h.b16 %v364
    %v950 = vunpack.c.l.b16 %v365
    %v951 = vunpack.c.h.b16 %v365
    %v952 = vunpack.c.l.b16 %v366
    %v953 = vunpack.c.h.b16 %v366
    %v954 = vunpack.c.l.b16 %v367
    %v955 = vunpack.c.h.b16 %v367
    %v956 = vunpack.c.l.b16 %v368
    %v957 = vunpack.c.h.b16 %v368
    %v958 = vunpack.c.l.b16 %v369
    %v959 = vunpack.c.h.b16 %v369
    %v960 = vunpack.c.l.b16 %v370
    %v961 = vunpack.c.h.b16 %v370
    %v962 = vunpack.c.l.b16 %v371
    %v963 = vunpack.c.h.b16 %v371
    %v964 = vunpack.c.l.b16 %v372
    %v965 = vunpack.c.h.b16 %v372
    %v966 = vunpack.c.l.b16 %v373
    %v967 = vunpack.c.h.b16 %v373
    %v968 = vunpack.c.l.b16 %v374
    %v969 = vunpack.c.h.b16 %v374
    %v970 = vunpack.c.l.b16 %v375
    %v971 = vunpack.c.h.b16 %v375
    %v972 = vunpack.c.l.b16 %v376
    %v973 = vunpack.c.h.b16 %v376
    %v974 = vunpack.c.l.b16 %v377
    %v975 = vunpack.c.h.b16 %v377
    %v976 = vunpack.c.l.b16 %v378
    %v977 = vunpack.c.h.b16 %v378
    %v978 = vunpack.c.l.b16 %v379
    %v979 = vunpack.c.h.b16 %v379
    %v980 = vunpack.c.l.b16 %v380
    %v981 = vunpack.c.h.b16 %v380
    %v982 = vunpack.c.l.b16 %v381
    %v983 = vunpack.c.h.b16 %v381
    %v984 = vunpack.c.l.b16 %v382
    %v985 = vunpack.c.h.b16 %v382
    %v986 = vunpack.c.l.b16 %v383
    %v987 = vunpack.c.h.b16 %v383
    %v988 = vunpack.c.l.b16 %v384
    %v989 = vunpack.c.h.b16 %v384
    %v990 = vunpack.c.l.b16 %v385
    %v991 = vunpack.c.h.b16 %v385
    %v992 = vunpack.c.l.b16 %v386
    %v993 = vunpack.c.h.b16 %v386
    %v994 = vunpack.c.l.b16 %v387
    %v995 = vunpack.c.h.b16 %v387
    %v996 = vunpack.c.l.b16 %v388
    %v997 = vunpack.c.h.b16 %v388
    %v998 = vunpack.c.l.b16 %v389
    %v999 = vunpack.c.h.b16 %v389
    %v1000 = vunpack.c.l.b16 %v390
    %v1001 = vunpack.c.h.b16 %v390
    %v1002 = vunpack.c.l.b16 %v391
    %v1003 = vunpack.c.h.b16 %v391
    %v1004 = vunpack.c.l.b16 %v392
    %v1005 = vunpack.c.h.b16 %v392
    %v1006 = vunpack.c.l.b16 %v393
    %v1007 = vunpack.c.h.b16 %v393
    %v1008 = vunpack.c.l.b16 %v394
    %v1009 = vunpack.c.h.b16 %v394
    %v1010 = vunpack.c.l.b16 %v395
    %v1011 = vunpack.c.h.b16 %v395
    %v1012 = vunpack.c.l.b16 %v396
    %v1013 = vunpack.c.h.b16 %v396
    %v1014 = vunpack.c.l.b16 %v397
    %v1015 = vunpack.c.h.b16 %v397
    %v1016 = vunpack.c.l.b16 %v398
    %v1017 = vunpack.c.h.b16 %v398
    %v1018 = vunpack.c.l.b16 %v399
    %v1019 = vunpack.c.h.b16 %v399
    %v1020 = vunpack.c.l.b16 %v400
    %v1021 = vunpack.c.h.b16 %v400
    %v1022 = vunpack.c.l.b16 %v401
    %v1023 = vunpack.c.h.b16 %v401
    %v1024 = vunpack.c.l.b16 %v402
    %v1025 = vunpack.c.h.b16 %v402
    %v1026 = vunpack.c.l.b16 %v403
    %v1027 = vunpack.c.h.b16 %v403
    %v1028 = vunpack.c.l.b16 %v404
    %v1029 = vunpack.c.h.b16 %v404
    %v1030 = vunpack.c.l.b16 %v405
    %v1031 = vunpack.c.h.b16 %v405
    %v1032 = vunpack.c.l.b16 %v406
    %v1033 = vunpack.c.h.b16 %v406
    %v1034 = vunpack.c.l.b16 %v407
    %v1035 = vunpack.c.h.b16 %v407
    %v1036 = vunpack.c.l.b16 %v408
    %v1037 = vunpack.c.h.b16 %v408
    %v1038 = vunpack.c.l.b16 %v409
    %v1039 = vunpack.c.h.b16 %v409
    %v1040 = vunpack.c.l.b16 %v410
    %v1041 = vunpack.c.h.b16 %v410
    %v1042 = vunpack.c.l.b16 %v411
    %v1043 = vunpack.c.h.b16 %v411
    %v1044 = vunpack.c.l.b16 %v412
    %v1045 = vunpack.c.h.b16 %v412
    %v1046 = vunpack.c.l.b16 %v413
    %v1047 = vunpack.c.h.b16 %v413
    %v1048 = vunpack.c.l.b16 %v414
    %v1049 = vunpack.c.h.b16 %v414
    %v1050 = vunpack.c.l.b16 %v415
    %v1051 = vunpack.c.h.b16 %v415
    %v1052 = vunpack.c.l.b16 %v416
    %v1053 = vunpack.c.h.b16 %v416
    %v1054 = vunpack.c.l.b16 %v417
    %v1055 = vunpack.c.h.b16 %v417
    %v1056 = vunpack.c.l.b16 %v418
    %v1057 = vunpack.c.h.b16 %v418
    %v1058 = vunpack.c.l.b16 %v419
    %v1059 = vunpack.c.h.b16 %v419
    %v1060 = vunpack.c.l.b16 %v420
    %v1061 = vunpack.c.h.b16 %v420
    %v1062 = vunpack.c.l.b16 %v421
    %v1063 = vunpack.c.h.b16 %v421
    %v1064 = vunpack.c.l.b16 %v422
    %v1065 = vunpack.c.h.b16 %v422
    %v1066 = vunpack.c.l.b16 %v423
    %v1067 = vunpack.c.h.b16 %v423
    %v1068 = vunpack.c.l.b16 %v424
    %v1069 = vunpack.c.h.b16 %v424
    %v1070 = vunpack.c.l.b16 %v425
    %v1071 = vunpack.c.h.b16 %v425
    %v1072 = vunpack.c.l.b16 %v426
    %v1073 = vunpack.c.h.b16 %v426
    %v1074 = vunpack.c.l.b16 %v427
    %v1075 = vunpack.c.h.b16 %v427
    %v1076 = vunpack.c.l.b16 %v428
    %v1077 = vunpack.c.h.b16 %v428
    %v1078 = vunpack.c.l.b16 %v429
    %v1079 = vunpack.c.h.b16 %v429
    %v1080 = vunpack.c.l.b16 %v430
    %v1081 = vunpack.c.h.b16 %v430
    %v1082 = vunpack.c.l.b16 %v431
    %v1083 = vunpack.c.h.b16 %v431
    %v1084 = vunpack.c.l.b16 %v432
    %v1085 = vunpack.c.h.b16 %v432
    %v1086 = vunpack.c.l.b16 %v433
    %v1087 = vunpack.c.h.b16 %v433
    %v1088 = vunpack.c.l.b16 %v434
    %v1089 = vunpack.c.h.b16 %v434
    %v1090 = vunpack.c.l.b16 %v435
    %v1091 = vunpack.c.h.b16 %v435
    %v1092 = vunpack.c.l.b16 %v436
    %v1093 = vunpack.c.h.b16 %v436
    %v1094 = vunpack.c.l.b16 %v437
    %v1095 = vunpack.c.h.b16 %v437
    %v1096 = vunpack.c.l.b16 %v438
    %v1097 = vunpack.c.h.b16 %v438
    %v1098 = vunpack.c.l.b16 %v439
    %v1099 = vunpack.c.h.b16 %v439
    %v1100 = vunpack.c.l.b16 %v440
    %v1101 = vunpack.c.h.b16 %v440
    %v1102 = vunpack.c.l.b16 %v441
    %v1103 = vunpack.c.h.b16 %v441
    %v1104 = vunpack.c.l.b16 %v442
    %v1105 = vunpack.c.h.b16 %v442
    %v1106 = vunpack.c.l.b16 %v443
    %v1107 = vunpack.c.h.b16 %v443
    %v1108 = vunpack.c.l.b16 %v444
    %v1109 = vunpack.c.h.b16 %v444
    %v1110 = vunpack.c.l.b16 %v445
    %v1111 = vunpack.c.h.b16 %v445
    %v1112 = vunpack.c.l.b16 %v446
    %v1113 = vunpack.c.h.b16 %v446
    %v1114 = vunpack.c.l.b16 %v447
    %v1115 = vunpack.c.h.b16 %v447
    %v1116 = vunpack.c.l.b16 %v448
    %v1117 = vunpack.c.h.b16 %v448
    %v1118 = vunpack.c.l.b16 %v449
    %v1119 = vunpack.c.h.b16 %v449
    %v1120 = vunpack.c.l.b16 %v450
    %v1121 = vunpack.c.h.b16 %v450
    %v1122 = vunpack.c.l.b16 %v451
    %v1123 = vunpack.c.h.b16 %v451
    %v1124 = vunpack.c.l.b16 %v452
    %v1125 = vunpack.c.h.b16 %v452
    %v1126 = vunpack.c.l.b16 %v453
    %v1127 = vunpack.c.h.b16 %v453
    %v1128 = vunpack.c.l.b16 %v454
    %v1129 = vunpack.c.h.b16 %v454
    %v1130 = vunpack.c.l.b16 %v455
    %v1131 = vunpack.c.h.b16 %v455
    %v1132 = vunpack.c.l.b16 %v456
    %v1133 = vunpack.c.h.b16 %v456
    %v1134 = vunpack.c.l.b16 %v457
    %v1135 = vunpack.c.h.b16 %v457
    %v1136 = vunpack.c.l.b16 %v458
    %v1137 = vunpack.c.h.b16 %v458
    %v1138 = vunpack.c.l.b16 %v459
    %v1139 = vunpack.c.h.b16 %v459
    %v1140 = vunpack.c.l.b16 %v460
    %v1141 = vunpack.c.h.b16 %v460
    %v1142 = vunpack.c.l.b16 %v461
    %v1143 = vunpack.c.h.b16 %v461
    %v1144 = vunpack.c.l.b16 %v462
    %v1145 = vunpack.c.h.b16 %v462
    %v1146 = vunpack.c.l.b16 %v463
    %v1147 = vunpack.c.h.b16 %v463
    %v1148 = vunpack.c.l.b16 %v464
    %v1149 = vunpack.c.h.b16 %v464
    %v1150 = vunpack.c.l.b16 %v465
    %v1151 = vunpack.c.h.b16 %v465
    %v1152 = vunpack.c.l.b16 %v466
    %v1153 = vunpack.c.h.b16 %v466
    %v1154 = vunpack.c.l.b16 %v467
    %v1155 = vunpack.c.h.b16 %v467
    %v1156 = vunpack.c.l.b16 %v468
    %v1157 = vunpack.c.h.b16 %v468
    %v1158 = vunpack.c.l.b16 %v469
    %v1159 = vunpack.c.h.b16 %v469
    %v1160 = vunpack.c.l.b16 %v470
    %v1161 = vunpack.c.h.b16 %v470
    %v1162 = vunpack.c.l.b16 %v471
    %v1163 = vunpack.c.h.b16 %v471
    %v1164 = vunpack.c.l.b16 %v472
    %v1165 = vunpack.c.h.b16 %v472
    %v1166 = vunpack.c.l.b16 %v473
    %v1167 = vunpack.c.h.b16 %v473
    %v1168 = vunpack.c.l.b16 %v474
    %v1169 = vunpack.c.h.b16 %v474
    %v1170 = vunpack.c.l.b16 %v475
    %v1171 = vunpack.c.h.b16 %v475
    %v1172 = vunpack.c.l.b16 %v476
    %v1173 = vunpack.c.h.b16 %v476
    %v1174 = vunpack.c.l.b16 %v477
    %v1175 = vunpack.c.h.b16 %v477
    %v1176 = vunpack.c.l.b16 %v478
    %v1177 = vunpack.c.h.b16 %v478
    %v1178 = vunpack.c.l.b16 %v479
    %v1179 = vunpack.c.h.b16 %v479
    %v1180 = vunpack.c.l.b16 %v480
    %v1181 = vunpack.c.h.b16 %v480
    %v1182 = vunpack.c.l.b16 %v481
    %v1183 = vunpack.c.h.b16 %v481
    %v1184 = vunpack.c.l.b16 %v482
    %v1185 = vunpack.c.h.b16 %v482
    %v1186 = vunpack.c.l.b16 %v483
    %v1187 = vunpack.c.h.b16 %v483
    %v1188 = vunpack.c.l.b16 %v484
    %v1189 = vunpack.c.h.b16 %v484
    %v1190 = vunpack.c.l.b16 %v485
    %v1191 = vunpack.c.h.b16 %v485
    %v1192 = vunpack.c.l.b16 %v486
    %v1193 = vunpack.c.h.b16 %v486
    %v1194 = vunpack.c.l.b16 %v487
    %v1195 = vunpack.c.h.b16 %v487
    %v1196 = vunpack.c.l.b16 %v488
    %v1197 = vunpack.c.h.b16 %v488
    %v1198 = vunpack.c.l.b16 %v489
    %v1199 = vunpack.c.h.b16 %v489
    %v1200 = vunpack.c.l.b16 %v490
    %v1201 = vunpack.c.h.b16 %v490
    %v1202 = vunpack.c.l.b16 %v491
    %v1203 = vunpack.c.h.b16 %v491
    %v1204 = vunpack.c.l.b16 %v492
    %v1205 = vunpack.c.h.b16 %v492
    %v1206 = vunpack.c.l.b16 %v493
    %v1207 = vunpack.c.h.b16 %v493
    %v1208 = vunpack.c.l.b16 %v494
    %v1209 = vunpack.c.h.b16 %v494
    %v1210 = vunpack.c.l.b16 %v495
    %v1211 = vunpack.c.h.b16 %v495
    %v1212 = vunpack.c.l.b16 %v496
    %v1213 = vunpack.c.h.b16 %v496
    %v1214 = vunpack.c.l.b16 %v497
    %v1215 = vunpack.c.h.b16 %v497
    %v1216 = vunpack.c.l.b16 %v498
    %v1217 = vunpack.c.h.b16 %v498
    %v1218 = vunpack.c.l.b16 %v499
    %v1219 = vunpack.c.h.b16 %v499
    %v1220 = vunpack.c.l.b16 %v500
    %v1221 = vunpack.c.h.b16 %v500
    %v1222 = vunpack.c.l.b16 %v501
    %v1223 = vunpack.c.h.b16 %v501
    %v1224 = vunpack.c.l.b16 %v502
    %v1225 = vunpack.c.h.b16 %v502
    %v1226 = vunpack.c.l.b16 %v503
    %v1227 = vunpack.c.h.b16 %v503
    %v1228 = vunpack.c.l.b16 %v504
    %v1229 = vunpack.c.h.b16 %v504
    %v1230 = vunpack.c.l.b16 %v505
    %v1231 = vunpack.c.h.b16 %v505
    %v1232 = vunpack.c.l.b16 %v506
    %v1233 = vunpack.c.h.b16 %v506
    %v1234 = vunpack.c.l.b16 %v507
    %v1235 = vunpack.c.h.b16 %v507
    %v1236 = vunpack.c.l.b16 %v508
    %v1237 = vunpack.c.h.b16 %v508
    %v1238 = vunpack.c.l.b16 %v509
    %v1239 = vunpack.c.h.b16 %v509
    %v1240 = vunpack.c.l.b16 %v510
    %v1241 = vunpack.c.h.b16 %v510
    %v1242 = vunpack.c.l.b16 %v511
    %v1243 = vunpack.c.h.b16 %v511
    %v1244 = vunpack.c.l.b16 %v512
    %v1245 = vunpack.c.h.b16 %v512
    %v1246 = vunpack.c.l.b16 %v513
    %v1247 = vunpack.c.h.b16 %v513
    %v1248 = vunpack.c.l.b16 %v514
    %v1249 = vunpack.c.h.b16 %v514
    %v1250 = vunpack.c.l.b16 %v515
    %v1251 = vunpack.c.h.b16 %v515
    %v1252 = vunpack.c.l.b16 %v516
    %v1253 = vunpack.c.h.b16 %v516
    %v1254 = vunpack.c.l.b16 %v517
    %v1255 = vunpack.c.h.b16 %v517
    %v1256 = vunpack.c.l.b16 %v518
    %v1257 = vunpack.c.h.b16 %v518
    %v1258 = vunpack.c.l.b16 %v519
    %v1259 = vunpack.c.h.b16 %v519
    %v1260 = vunpack.c.l.b16 %v520
    %v1261 = vunpack.c.h.b16 %v520
    %v1262 = vunpack.c.l.b16 %v521
    %v1263 = vunpack.c.h.b16 %v521
    %v1264 = vunpack.c.l.b16 %v522
    %v1265 = vunpack.c.h.b16 %v522
    %v1266 = vunpack.c.l.b16 %v523
    %v1267 = vunpack.c.h.b16 %v523
    %v1268 = vunpack.c.l.b16 %v524
    %v1269 = vunpack.c.h.b16 %v524
    %v1270 = vunpack.c.l.b16 %v525
    %v1271 = vunpack.c.h.b16 %v525
    %v1272 = vunpack.c.l.b16 %v526
    %v1273 = vunpack.c.h.b16 %v526
    %v1274 = vunpack.c.l.b16 %v527
    %v1275 = vunpack.c.h.b16 %v527
    %v1276 = vunpack.c.l.b16 %v528
    %v1277 = vunpack.c.h.b16 %v528
    %v1278 = vunpack.c.l.b16 %v529
    %v1279 = vunpack.c.h.b16 %v529
    %v1280 = vunpack.c.l.b16 %v530
    %v1281 = vunpack.c.h.b16 %v530
    %v1282 = vunpack.c.l.b16 %v531
    %v1283 = vunpack.c.h.b16 %v531
    %v1284 = vunpack.c.l.b16 %v532
    %v1285 = vunpack.c.h.b16 %v532
    %v1286 = vunpack.c.l.b16 %v533
    %v1287 = vunpack.c.h.b16 %v533
    %v1288 = vunpack.c.l.b16 %v534
    %v1289 = vunpack.c.h.b16 %v534
    %v1290 = vunpack.c.l.b16 %v535
    %v1291 = vunpack.c.h.b16 %v535
    %v1292 = vunpack.c.l.b16 %v536
    %v1293 = vunpack.c.h.b16 %v536
    %v1294 = vunpack.c.l.b16 %v537
    %v1295 = vunpack.c.h.b16 %v537
    %v1296 = vunpack.c.l.b16 %v538
    %v1297 = vunpack.c.h.b16 %v538
    %v1298 = vunpack.c.l.b16 %v539
    %v1299 = vunpack.c.h.b16 %v539
    %v1300 = vunpack.c.l.b16 %v540
    %v1301 = vunpack.c.h.b16 %v540
    %v1302 = vunpack.c.l.b16 %v541
    %v1303 = vunpack.c.h.b16 %v541
    %v1304 = vunpack.c.l.b16 %v542
    %v1305 = vunpack.c.h.b16 %v542
    %v1306 = vunpack.c.l.b16 %v543
    %v1307 = vunpack.c.h.b16 %v543
    %v1308 = vunpack.c.l.b16 %v544
    %v1309 = vunpack.c.h.b16 %v544
    %v1310 = vunpack.c.l.b16 %v545
    %v1311 = vunpack.c.h.b16 %v545
    %v1312 = vunpack.c.l.b16 %v546
    %v1313 = vunpack.c.h.b16 %v546
    %v1314 = vunpack.c.l.b16 %v547
    %v1315 = vunpack.c.h.b16 %v547
    %v1316 = vunpack.c.l.b16 %v548
    %v1317 = vunpack.c.h.b16 %v548
    %v1318 = vunpack.c.l.b16 %v549
    %v1319 = vunpack.c.h.b16 %v549
    %v1320 = vunpack.c.l.b16 %v550
    %v1321 = vunpack.c.h.b16 %v550
    %v1322 = vunpack.c.l.b16 %v551
    %v1323 = vunpack.c.h.b16 %v551
    %v1324 = vunpack.c.l.b16 %v552
    %v1325 = vunpack.c.h.b16 %v552
    %v1326 = vunpack.c.l.b16 %v553
    %v1327 = vunpack.c.h.b16 %v553
    %v1328 = vunpack.c.l.b16 %v554
    %v1329 = vunpack.c.h.b16 %v554
    %v1330 = vunpack.c.l.b16 %v555
    %v1331 = vunpack.c.h.b16 %v555
    %v1332 = vunpack.c.l.b16 %v556
    %v1333 = vunpack.c.h.b16 %v556
    %v1334 = vunpack.c.l.b16 %v557
    %v1335 = vunpack.c.h.b16 %v557
    %v1336 = vpack.c.b16 %v828, %v824
    %v1337 = vpack.c.b16 %v829, %v825
    %v1338 = vpack.c.b16 %v830, %v826
    %v1339 = vpack.c.b16 %v831, %v827
    %v1340 = vpack.c.b16 %v836, %v832
    %v1341 = vpack.c.b16 %v837, %v833
    %v1342 = vpack.c.b16 %v838, %v834
    %v1343 = vpack.c.b16 %v839, %v835
    %v1344 = vpack.c.b16 %v844, %v840
    %v1345 = vpack.c.b16 %v845, %v841
    %v1346 = vpack.c.b16 %v846, %v842
    %v1347 = vpack.c.b16 %v847, %v843
    %v1348 = vpack.c.b16 %v852, %v848
    %v1349 = vpack.c.b16 %v853, %v849
    %v1350 = vpack.c.b16 %v854, %v850
    %v1351 = vpack.c.b16 %v855, %v851
    %v1352 = vpack.c.b16 %v860, %v856
    %v1353 = vpack.c.b16 %v861, %v857
    %v1354 = vpack.c.b16 %v862, %v858
    %v1355 = vpack.c.b16 %v863, %v859
    %v1356 = vpack.c.b16 %v868, %v864
    %v1357 = vpack.c.b16 %v869, %v865
    %v1358 = vpack.c.b16 %v870, %v866
    %v1359 = vpack.c.b16 %v871, %v867
    %v1360 = vpack.c.b16 %v876, %v872
    %v1361 = vpack.c.b16 %v877, %v873
    %v1362 = vpack.c.b16 %v878, %v874
    %v1363 = vpack.c.b16 %v879, %v875
    %v1364 = vpack.c.b16 %v884, %v880
    %v1365 = vpack.c.b16 %v885, %v881
    %v1366 = vpack.c.b16 %v886, %v882
    %v1367 = vpack.c.b16 %v887, %v883
    %v1368 = vpack.c.b16 %v892, %v888
    %v1369 = vpack.c.b16 %v893, %v889
    %v1370 = vpack.c.b16 %v894, %v890
    %v1371 = vpack.c.b16 %v895, %v891
    %v1372 = vpack.c.b16 %v900, %v896
    %v1373 = vpack.c.b16 %v901, %v897
    %v1374 = vpack.c.b16 %v902, %v898
    %v1375 = vpack.c.b16 %v903, %v899
    %v1376 = vpack.c.b16 %v908, %v904
    %v1377 = vpack.c.b16 %v909, %v905
    %v1378 = vpack.c.b16 %v910, %v906
    %v1379 = vpack.c.b16 %v911, %v907
    %v1380 = vpack.c.b16 %v916, %v912
    %v1381 = vpack.c.b16 %v917, %v913
    %v1382 = vpack.c.b16 %v918, %v914
    %v1383 = vpack.c.b16 %v919, %v915
    %v1384 = vpack.c.b16 %v924, %v920
    %v1385 = vpack.c.b16 %v925, %v921
    %v1386 = vpack.c.b16 %v926, %v922
    %v1387 = vpack.c.b16 %v927, %v923
    %v1388 = vpack.c.b16 %v932, %v928
    %v1389 = vpack.c.b16 %v933, %v929
    %v1390 = vpack.c.b16 %v934, %v930
    %v1391 = vpack.c.b16 %v935, %v931
    %v1392 = vpack.c.b16 %v940, %v936
    %v1393 = vpack.c.b16 %v941, %v937
    %v1394 = vpack.c.b16 %v942, %v938
    %v1395 = vpack.c.b16 %v943, %v939
    %v1396 = vpack.c.b16 %v948, %v944
    %v1397 = vpack.c.b16 %v949, %v945
    %v1398 = vpack.c.b16 %v950, %v946
    %v1399 = vpack.c.b16 %v951, %v947
    %v1400 = vpack.c.b16 %v956, %v952
    %v1401 = vpack.c.b16 %v957, %v953
    %v1402 = vpack.c.b16 %v958, %v954
    %v1403 = vpack.c.b16 %v959, %v955
    %v1404 = vpack.c.b16 %v964, %v960
    %v1405 = vpack.c.b16 %v965, %v961
    %v1406 = vpack.c.b16 %v966, %v962
    %v1407 = vpack.c.b16 %v967, %v963
    %v1408 = vpack.c.b16 %v972, %v968
    %v1409 = vpack.c.b16 %v973, %v969
    %v1410 = vpack.c.b16 %v974, %v970
    %v1411 = vpack.c.b16 %v975, %v971
    %v1412 = vpack.c.b16 %v980, %v976
    %v1413 = vpack.c.b16 %v981, %v977
    %v1414 = vpack.c.b16 %v982, %v978
    %v1415 = vpack.c.b16 %v983, %v979
    %v1416 = vpack.c.b16 %v988, %v984
    %v1417 = vpack.c.b16 %v989, %v985
    %v1418 = vpack.c.b16 %v990, %v986
    %v1419 = vpack.c.b16 %v991, %v987
    %v1420 = vpack.c.b16 %v996, %v992
    %v1421 = vpack.c.b16 %v997, %v993
    %v1422 = vpack.c.b16 %v998, %v994
    %v1423 = vpack.c.b16 %v999, %v995
    %v1424 = vpack.c.b16 %v1004, %v1000
    %v1425 = vpack.c.b16 %v1005, %v1001
    %v1426 = vpack.c.b16 %v1006, %v1002
    %v1427 = vpack.c.b16 %v1007, %v1003
    %v1428 = vpack.c.b16 %v1012, %v1008
    %v1429 = vpack.c.b16 %v1013, %v1009
    %v1430 = vpack.c.b16 %v1014, %v1010
    %v1431 = vpack.c.b16 %v1015, %v1011
    %v1432 = vpack.c.b16 %v1020, %v1016
    %v1433 = vpack.c.b16 %v1021, %v1017
    %v1434 = vpack.c.b16 %v1022, %v1018
    %v1435 = vpack.c.b16 %v1023, %v1019
    %v1436 = vpack.c.b16 %v1028, %v1024
    %v1437 = vpack.c.b16 %v1029, %v1025
    %v1438 = vpack.c.b16 %v1030, %v1026
    %v1439 = vpack.c.b16 %v1031, %v1027
    %v1440 = vpack.c.b16 %v1036, %v1032
    %v1441 = vpack.c.b16 %v1037, %v1033
    %v1442 = vpack.c.b16 %v1038, %v1034
    %v1443 = vpack.c.b16 %v1039, %v1035
    %v1444 = vpack.c.b16 %v1044, %v1040
    %v1445 = vpack.c.b16 %v1045, %v1041
    %v1446 = vpack.c.b16 %v1046, %v1042
    %v1447 = vpack.c.b16 %v1047, %v1043
    %v1448 = vpack.c.b16 %v1052, %v1048
    %v1449 = vpack.c.b16 %v1053, %v1049
    %v1450 = vpack.c.b16 %v1054, %v1050
    %v1451 = vpack.c.b16 %v1055, %v1051
    %v1452 = vpack.c.b16 %v1060, %v1056
    %v1453 = vpack.c.b16 %v1061, %v1057
    %v1454 = vpack.c.b16 %v1062, %v1058
    %v1455 = vpack.c.b16 %v1063, %v1059
    %v1456 = vpack.c.b16 %v1068, %v1064
    %v1457 = vpack.c.b16 %v1069, %v1065
    %v1458 = vpack.c.b16 %v1070, %v1066
    %v1459 = vpack.c.b16 %v1071, %v1067
    %v1460 = vpack.c.b16 %v1076, %v1072
    %v1461 = vpack.c.b16 %v1077, %v1073
    %v1462 = vpack.c.b16 %v1078, %v1074
    %v1463 = vpack.c.b16 %v1079, %v1075
    %v1464 = vpack.c.b16 %v1084, %v1080
    %v1465 = vpack.c.b16 %v1085, %v1081
    %v1466 = vpack.c.b16 %v1086, %v1082
    %v1467 = vpack.c.b16 %v1087, %v1083
    %v1468 = vpack.c.b16 %v1092, %v1088
    %v1469 = vpack.c.b16 %v1093, %v1089
    %v1470 = vpack.c.b16 %v1094, %v1090
    %v1471 = vpack.c.b16 %v1095, %v1091
    %v1472 = vpack.c.b16 %v1100, %v1096
    %v1473 = vpack.c.b16 %v1101, %v1097
    %v1474 = vpack.c.b16 %v1102, %v1098
    %v1475 = vpack.c.b16 %v1103, %v1099
    %v1476 = vpack.c.b16 %v1108, %v1104
    %v1477 = vpack.c.b16 %v1109, %v1105
    %v1478 = vpack.c.b16 %v1110, %v1106
    %v1479 = vpack.c.b16 %v1111, %v1107
    %v1480 = vpack.c.b16 %v1116, %v1112
    %v1481 = vpack.c.b16 %v1117, %v1113
    %v1482 = vpack.c.b16 %v1118, %v1114
    %v1483 = vpack.c.b16 %v1119, %v1115
    %v1484 = vpack.c.b16 %v1124, %v1120
    %v1485 = vpack.c.b16 %v1125, %v1121
    %v1486 = vpack.c.b16 %v1126, %v1122
    %v1487 = vpack.c.b16 %v1127, %v1123
    %v1488 = vpack.c.b16 %v1132, %v1128
    %v1489 = vpack.c.b16 %v1133, %v1129
    %v1490 = vpack.c.b16 %v1134, %v1130
    %v1491 = vpack.c.b16 %v1135, %v1131
    %v1492 = vpack.c.b16 %v1140, %v1136
    %v1493 = vpack.c.b16 %v1141, %v1137
    %v1494 = vpack.c.b16 %v1142, %v1138
    %v1495 = vpack.c.b16 %v1143, %v1139
    %v1496 = vpack.c.b16 %v1148, %v1144
    %v1497 = vpack.c.b16 %v1149, %v1145
    %v1498 = vpack.c.b16 %v1150, %v1146
    %v1499 = vpack.c.b16 %v1151, %v1147
    %v1500 = vpack.c.b16 %v1156, %v1152
    %v1501 = vpack.c.b16 %v1157, %v1153
    %v1502 = vpack.c.b16 %v1158, %v1154
    %v1503 = vpack.c.b16 %v1159, %v1155
    %v1504 = vpack.c.b16 %v1164, %v1160
    %v1505 = vpack.c.b16 %v1165, %v1161
    %v1506 = vpack.c.b16 %v1166, %v1162
    %v1507 = vpack.c.b16 %v1167, %v1163
    %v1508 = vpack.c.b16 %v1172, %v1168
    %v1509 = vpack.c.b16 %v1173, %v1169
    %v1510 = vpack.c.b16 %v1174, %v1170
    %v1511 = vpack.c.b16 %v1175, %v1171
    %v1512 = vpack.c.b16 %v1180, %v1176
    %v1513 = vpack.c.b16 %v1181, %v1177
    %v1514 = vpack.c.b16 %v1182, %v1178
    %v1515 = vpack.c.b16 %v1183, %v1179
    %v1516 = vpack.c.b16 %v1188, %v1184
    %v1517 = vpack.c.b16 %v1189, %v1185
    %v1518 = vpack.c.b16 %v1190, %v1186
    %v1519 = vpack.c.b16 %v1191, %v1187
    %v1520 = vpack.c.b16 %v1196, %v1192
    %v1521 = vpack.c.b16 %v1197, %v1193
    %v1522 = vpack.c.b16 %v1198, %v1194
    %v1523 = vpack.c.b16 %v1199, %v1195
    %v1524 = vpack.c.b16 %v1204, %v1200
    %v1525 = vpack.c.b16 %v1205, %v1201
    %v1526 = vpack.c.b16 %v1206, %v1202
    %v1527 = vpack.c.b16 %v1207, %v1203
    %v1528 = vpack.c.b16 %v1212, %v1208
    %v1529 = vpack.c.b16 %v1213, %v1209
    %v1530 = vpack.c.b16 %v1214, %v1210
    %v1531 = vpack.c.b16 %v1215, %v1211
    %v1532 = vpack.c.b16 %v1220, %v1216
    %v1533 = vpack.c.b16 %v1221, %v1217
    %v1534 = vpack.c.b16 %v1222, %v1218
    %v1535 = vpack.c.b16 %v1223, %v1219
    %v1536 = vpack.c.b16 %v1228, %v1224
    %v1537 = vpack.c.b16 %v1229, %v1225
    %v1538 = vpack.c.b16 %v1230, %v1226
    %v1539 = vpack.c.b16 %v1231, %v1227
    %v1540 = vpack.c.b16 %v1236, %v1232
    %v1541 = vpack.c.b16 %v1237, %v1233
    %v1542 = vpack.c.b16 %v1238, %v1234
    %v1543 = vpack.c.b16 %v1239, %v1235
    %v1544 = vpack.c.b16 %v1244, %v1240
    %v1545 = vpack.c.b16 %v1245, %v1241
    %v1546 = vpack.c.b16 %v1246, %v1242
    %v1547 = vpack.c.b16 %v1247, %v1243
    %v1548 = vpack.c.b16 %v1252, %v1248
    %v1549 = vpack.c.b16 %v1253, %v1249
    %v1550 = vpack.c.b16 %v1254, %v1250
    %v1551 = vpack.c.b16 %v1255, %v1251
    %v1552 = vpack.c.b16 %v1260, %v1256
    %v1553 = vpack.c.b16 %v1261, %v1257
    %v1554 = vpack.c.b16 %v1262, %v1258
    %v1555 = vpack.c.b16 %v1263, %v1259
    %v1556 = vpack.c.b16 %v1268, %v1264
    %v1557 = vpack.c.b16 %v1269, %v1265
    %v1558 = vpack.c.b16 %v1270, %v1266
    %v1559 = vpack.c.b16 %v1271, %v1267
    %v1560 = vpack.c.b16 %v1276, %v1272
    %v1561 = vpack.c.b16 %v1277, %v1273
    %v1562 = vpack.c.b16 %v1278, %v1274
    %v1563 = vpack.c.b16 %v1279, %v1275
    %v1564 = vpack.c.b16 %v1284, %v1280
    %v1565 = vpack.c.b16 %v1285, %v1281
    %v1566 = vpack.c.b16 %v1286, %v1282
    %v1567 = vpack.c.b16 %v1287, %v1283
    %v1568 = vpack.c.b16 %v1292, %v1288
    %v1569 = vpack.c.b16 %v1293, %v1289
    %v1570 = vpack.c.b16 %v1294, %v1290
    %v1571 = vpack.c.b16 %v1295, %v1291
    %v1572 = vpack.c.b16 %v1300, %v1296
    %v1573 = vpack.c.b16 %v1301, %v1297
    %v1574 = vpack.c.b16 %v1302, %v1298
    %v1575 = vpack.c.b16 %v1303, %v1299
    %v1576 = vpack.c.b16 %v1308, %v1304
    %v1577 = vpack.c.b16 %v1309, %v1305
    %v1578 = vpack.c.b16 %v1310, %v1306
    %v1579 = vpack.c.b16 %v1311, %v1307
    %v1580 = vpack.c.b16 %v1316, %v1312
    %v1581 = vpack.c.b16 %v1317, %v1313
    %v1582 = vpack.c.b16 %v1318, %v1314
    %v1583 = vpack.c.b16 %v1319, %v1315
    %v1584 = vpack.c.b16 %v1324, %v1320
    %v1585 = vpack.c.b16 %v1325, %v1321
    %v1586 = vpack.c.b16 %v1326, %v1322
    %v1587 = vpack.c.b16 %v1327, %v1323
    %v1588 = vpack.c.b16 %v1332, %v1328
    %v1589 = vpack.c.b16 %v1333, %v1329
    %v1590 = vpack.c.b16 %v1334, %v1330
    %v1591 = vpack.c.b16 %v1335, %v1331
    %1848 = vmatpush.bf16.msra.mxu0 %v1364
    %1849 = vmatpush.bf16.msra.mxu0 %v1360
    %1850 = vmatpush.bf16.msra.mxu0 %v1356
    %1851 = vmatpush.bf16.msra.mxu0 %v1352
    %1852 = vmatpush.bf16.msra.mxu0 %v1348
    %1853 = vmatpush.bf16.msra.mxu0 %v1344
    %1854 = vmatpush.bf16.msra.mxu0 %v1340
    %1855 = vmatpush.bf16.msra.mxu0 %v1336
    %1856 = vmatmul.bf16.gmra.mxu0 %v294
    %v1857 = vpop.f32.mrf.mxu0
    %v1858 = vadd.f32 %v560, %v1857
    %v1859 = vpop.f32.mrf.mxu0
    %1860 = vdwg.mxu0
    %1861 = vmatpush.bf16.msra.mxu0 %v1396
    %1862 = vmatpush.bf16.msra.mxu0 %v1392
    %1863 = vmatpush.bf16.msra.mxu0 %v1388
    %1864 = vmatpush.bf16.msra.mxu0 %v1384
    %1865 = vmatpush.bf16.msra.mxu0 %v1380
    %1866 = vmatpush.bf16.msra.mxu0 %v1376
    %1867 = vmatpush.bf16.msra.mxu0 %v1372
    %1868 = vmatpush.bf16.msra.mxu0 %v1368
    %1869 = vmatmul.bf16.gmra.mxu0 %v295
    %v1870 = vpop.f32.mrf.mxu0
    %v1871 = vadd.f32 %v1858, %v1870
    %v1872 = vpop.f32.mrf.mxu0
    %1873 = vdwg.mxu0
    %1874 = vmatpush.bf16.msra.mxu0 %v1428
    %1875 = vmatpush.bf16.msra.mxu0 %v1424
    %1876 = vmatpush.bf16.msra.mxu0 %v1420
    %1877 = vmatpush.bf16.msra.mxu0 %v1416
    %1878 = vmatpush.bf16.msra.mxu0 %v1412
    %1879 = vmatpush.bf16.msra.mxu0 %v1408
    %1880 = vmatpush.bf16.msra.mxu0 %v1404
    %1881 = vmatpush.bf16.msra.mxu0 %v1400
    %1882 = vmatmul.bf16.gmra.mxu0 %v296
    %v1883 = vpop.f32.mrf.mxu0
    %v1884 = vadd.f32 %v1871, %v1883
    %v1885 = vpop.f32.mrf.mxu0
    %1886 = vdwg.mxu0
    %1887 = vmatpush.bf16.msra.mxu0 %v1460
    %1888 = vmatpush.bf16.msra.mxu0 %v1456
    %1889 = vmatpush.bf16.msra.mxu0 %v1452
    %1890 = vmatpush.bf16.msra.mxu0 %v1448
    %1891 = vmatpush.bf16.msra.mxu0 %v1444
    %1892 = vmatpush.bf16.msra.mxu0 %v1440
    %1893 = vmatpush.bf16.msra.mxu0 %v1436
    %1894 = vmatpush.bf16.msra.mxu0 %v1432
    %1895 = vmatmul.bf16.gmra.mxu0 %v297
    %v1896 = vpop.f32.mrf.mxu0
    %v1897 = vadd.f32 %v1884, %v1896
    %v1898 = vpop.f32.mrf.mxu0
    %1899 = vdwg.mxu0
    %1900 = vmatpush.bf16.msra.mxu0 %v1492
    %1901 = vmatpush.bf16.msra.mxu0 %v1488
    %1902 = vmatpush.bf16.msra.mxu0 %v1484
    %1903 = vmatpush.bf16.msra.mxu0 %v1480
    %1904 = vmatpush.bf16.msra.mxu0 %v1476
    %1905 = vmatpush.bf16.msra.mxu0 %v1472
    %1906 = vmatpush.bf16.msra.mxu0 %v1468
    %1907 = vmatpush.bf16.msra.mxu0 %v1464
    %1908 = vmatmul.bf16.gmra.mxu0 %v298
    %v1909 = vpop.f32.mrf.mxu0
    %v1910 = vadd.f32 %v1897, %v1909
    %v1911 = vpop.f32.mrf.mxu0
    %1912 = vdwg.mxu0
    %1913 = vmatpush.bf16.msra.mxu0 %v1524
    %1914 = vmatpush.bf16.msra.mxu0 %v1520
    %1915 = vmatpush.bf16.msra.mxu0 %v1516
    %1916 = vmatpush.bf16.msra.mxu0 %v1512
    %1917 = vmatpush.bf16.msra.mxu0 %v1508
    %1918 = vmatpush.bf16.msra.mxu0 %v1504
    %1919 = vmatpush.bf16.msra.mxu0 %v1500
    %1920 = vmatpush.bf16.msra.mxu0 %v1496
    %1921 = vmatmul.bf16.gmra.mxu0 %v299
    %v1922 = vpop.f32.mrf.mxu0
    %v1923 = vadd.f32 %v1910, %v1922
    %v1924 = vpop.f32.mrf.mxu0
    %1925 = vdwg.mxu0
    %1926 = vmatpush.bf16.msra.mxu0 %v1556
    %1927 = vmatpush.bf16.msra.mxu0 %v1552
    %1928 = vmatpush.bf16.msra.mxu0 %v1548
    %1929 = vmatpush.bf16.msra.mxu0 %v1544
    %1930 = vmatpush.bf16.msra.mxu0 %v1540
    %1931 = vmatpush.bf16.msra.mxu0 %v1536
    %1932 = vmatpush.bf16.msra.mxu0 %v1532
    %1933 = vmatpush.bf16.msra.mxu0 %v1528
    %1934 = vmatmul.bf16.gmra.mxu0 %v300
    %v1935 = vpop.f32.mrf.mxu0
    %v1936 = vadd.f32 %v1923, %v1935
    %v1937 = vpop.f32.mrf.mxu0
    %1938 = vdwg.mxu0
    %1939 = vmatpush.bf16.msra.mxu0 %v1588
    %1940 = vmatpush.bf16.msra.mxu0 %v1584
    %1941 = vmatpush.bf16.msra.mxu0 %v1580
    %1942 = vmatpush.bf16.msra.mxu0 %v1576
    %1943 = vmatpush.bf16.msra.mxu0 %v1572
    %1944 = vmatpush.bf16.msra.mxu0 %v1568
    %1945 = vmatpush.bf16.msra.mxu0 %v1564
    %1946 = vmatpush.bf16.msra.mxu0 %v1560
    %1947 = vmatmul.bf16.gmra.mxu0 %v301
    %v1948 = vpop.f32.mrf.mxu0
    %v1949 = vadd.f32 %v1936, %v1948
    %v1950 = vpop.f32.mrf.mxu0
    %1951 = vdwg.mxu0
    %1952 = vmatpush.bf16.msra.mxu0 %v1365
    %1953 = vmatpush.bf16.msra.mxu0 %v1361
    %1954 = vmatpush.bf16.msra.mxu0 %v1357
    %1955 = vmatpush.bf16.msra.mxu0 %v1353
    %1956 = vmatpush.bf16.msra.mxu0 %v1349
    %1957 = vmatpush.bf16.msra.mxu0 %v1345
    %1958 = vmatpush.bf16.msra.mxu0 %v1341
    %1959 = vmatpush.bf16.msra.mxu0 %v1337
    %1960 = vmatmul.bf16.gmra.mxu0 %v294
    %v1961 = vpop.f32.mrf.mxu0
    %v1962 = vadd.f32 %v561, %v1961
    %v1963 = vpop.f32.mrf.mxu0
    %1964 = vdwg.mxu0
    %1965 = vmatpush.bf16.msra.mxu0 %v1397
    %1966 = vmatpush.bf16.msra.mxu0 %v1393
    %1967 = vmatpush.bf16.msra.mxu0 %v1389
    %1968 = vmatpush.bf16.msra.mxu0 %v1385
    %1969 = vmatpush.bf16.msra.mxu0 %v1381
    %1970 = vmatpush.bf16.msra.mxu0 %v1377
    %1971 = vmatpush.bf16.msra.mxu0 %v1373
    %1972 = vmatpush.bf16.msra.mxu0 %v1369
    %1973 = vmatmul.bf16.gmra.mxu0 %v295
    %v1974 = vpop.f32.mrf.mxu0
    %v1975 = vadd.f32 %v1962, %v1974
    %v1976 = vpop.f32.mrf.mxu0
    %1977 = vdwg.mxu0
    %1978 = vmatpush.bf16.msra.mxu0 %v1429
    %1979 = vmatpush.bf16.msra.mxu0 %v1425
    %1980 = vmatpush.bf16.msra.mxu0 %v1421
    %1981 = vmatpush.bf16.msra.mxu0 %v1417
    %1982 = vmatpush.bf16.msra.mxu0 %v1413
    %1983 = vmatpush.bf16.msra.mxu0 %v1409
    %1984 = vmatpush.bf16.msra.mxu0 %v1405
    %1985 = vmatpush.bf16.msra.mxu0 %v1401
    %1986 = vmatmul.bf16.gmra.mxu0 %v296
    %v1987 = vpop.f32.mrf.mxu0
    %v1988 = vadd.f32 %v1975, %v1987
    %v1989 = vpop.f32.mrf.mxu0
    %1990 = vdwg.mxu0
    %1991 = vmatpush.bf16.msra.mxu0 %v1461
    %1992 = vmatpush.bf16.msra.mxu0 %v1457
    %1993 = vmatpush.bf16.msra.mxu0 %v1453
    %1994 = vmatpush.bf16.msra.mxu0 %v1449
    %1995 = vmatpush.bf16.msra.mxu0 %v1445
    %1996 = vmatpush.bf16.msra.mxu0 %v1441
    %1997 = vmatpush.bf16.msra.mxu0 %v1437
    %1998 = vmatpush.bf16.msra.mxu0 %v1433
    %1999 = vmatmul.bf16.gmra.mxu0 %v297
    %v2000 = vpop.f32.mrf.mxu0
    %v2001 = vadd.f32 %v1988, %v2000
    %v2002 = vpop.f32.mrf.mxu0
    %2003 = vdwg.mxu0
    %2004 = vmatpush.bf16.msra.mxu0 %v1493
    %2005 = vmatpush.bf16.msra.mxu0 %v1489
    %2006 = vmatpush.bf16.msra.mxu0 %v1485
    %2007 = vmatpush.bf16.msra.mxu0 %v1481
    %2008 = vmatpush.bf16.msra.mxu0 %v1477
    %2009 = vmatpush.bf16.msra.mxu0 %v1473
    %2010 = vmatpush.bf16.msra.mxu0 %v1469
    %2011 = vmatpush.bf16.msra.mxu0 %v1465
    %2012 = vmatmul.bf16.gmra.mxu0 %v298
    %v2013 = vpop.f32.mrf.mxu0
    %v2014 = vadd.f32 %v2001, %v2013
    %v2015 = vpop.f32.mrf.mxu0
    %2016 = vdwg.mxu0
    %2017 = vmatpush.bf16.msra.mxu0 %v1525
    %2018 = vmatpush.bf16.msra.mxu0 %v1521
    %2019 = vmatpush.bf16.msra.mxu0 %v1517
    %2020 = vmatpush.bf16.msra.mxu0 %v1513
    %2021 = vmatpush.bf16.msra.mxu0 %v1509
    %2022 = vmatpush.bf16.msra.mxu0 %v1505
    %2023 = vmatpush.bf16.msra.mxu0 %v1501
    %2024 = vmatpush.bf16.msra.mxu0 %v1497
    %2025 = vmatmul.bf16.gmra.mxu0 %v299
    %v2026 = vpop.f32.mrf.mxu0
    %v2027 = vadd.f32 %v2014, %v2026
    %v2028 = vpop.f32.mrf.mxu0
    %2029 = vdwg.mxu0
    %2030 = vmatpush.bf16.msra.mxu0 %v1557
    %2031 = vmatpush.bf16.msra.mxu0 %v1553
    %2032 = vmatpush.bf16.msra.mxu0 %v1549
    %2033 = vmatpush.bf16.msra.mxu0 %v1545
    %2034 = vmatpush.bf16.msra.mxu0 %v1541
    %2035 = vmatpush.bf16.msra.mxu0 %v1537
    %2036 = vmatpush.bf16.msra.mxu0 %v1533
    %2037 = vmatpush.bf16.msra.mxu0 %v1529
    %2038 = vmatmul.bf16.gmra.mxu0 %v300
    %v2039 = vpop.f32.mrf.mxu0
    %v2040 = vadd.f32 %v2027, %v2039
    %v2041 = vpop.f32.mrf.mxu0
    %2042 = vdwg.mxu0
    %2043 = vmatpush.bf16.msra.mxu0 %v1589
    %2044 = vmatpush.bf16.msra.mxu0 %v1585
    %2045 = vmatpush.bf16.msra.mxu0 %v1581
    %2046 = vmatpush.bf16.msra.mxu0 %v1577
    %2047 = vmatpush.bf16.msra.mxu0 %v1573
    %2048 = vmatpush.bf16.msra.mxu0 %v1569
    %2049 = vmatpush.bf16.msra.mxu0 %v1565
    %2050 = vmatpush.bf16.msra.mxu0 %v1561
    %2051 = vmatmul.bf16.gmra.mxu0 %v301
    %v2052 = vpop.f32.mrf.mxu0
    %v2053 = vadd.f32 %v2040, %v2052
    %v2054 = vpop.f32.mrf.mxu0
    %2055 = vdwg.mxu0
    %2056 = vmatpush.bf16.msra.mxu0 %v1366
    %2057 = vmatpush.bf16.msra.mxu0 %v1362
    %2058 = vmatpush.bf16.msra.mxu0 %v1358
    %2059 = vmatpush.bf16.msra.mxu0 %v1354
    %2060 = vmatpush.bf16.msra.mxu0 %v1350
    %2061 = vmatpush.bf16.msra.mxu0 %v1346
    %2062 = vmatpush.bf16.msra.mxu0 %v1342
    %2063 = vmatpush.bf16.msra.mxu0 %v1338
    %2064 = vmatmul.bf16.gmra.mxu0 %v294
    %v2065 = vpop.f32.mrf.mxu0
    %v2066 = vadd.f32 %v562, %v2065
    %v2067 = vpop.f32.mrf.mxu0
    %2068 = vdwg.mxu0
    %2069 = vmatpush.bf16.msra.mxu0 %v1398
    %2070 = vmatpush.bf16.msra.mxu0 %v1394
    %2071 = vmatpush.bf16.msra.mxu0 %v1390
    %2072 = vmatpush.bf16.msra.mxu0 %v1386
    %2073 = vmatpush.bf16.msra.mxu0 %v1382
    %2074 = vmatpush.bf16.msra.mxu0 %v1378
    %2075 = vmatpush.bf16.msra.mxu0 %v1374
    %2076 = vmatpush.bf16.msra.mxu0 %v1370
    %2077 = vmatmul.bf16.gmra.mxu0 %v295
    %v2078 = vpop.f32.mrf.mxu0
    %v2079 = vadd.f32 %v2066, %v2078
    %v2080 = vpop.f32.mrf.mxu0
    %2081 = vdwg.mxu0
    %2082 = vmatpush.bf16.msra.mxu0 %v1430
    %2083 = vmatpush.bf16.msra.mxu0 %v1426
    %2084 = vmatpush.bf16.msra.mxu0 %v1422
    %2085 = vmatpush.bf16.msra.mxu0 %v1418
    %2086 = vmatpush.bf16.msra.mxu0 %v1414
    %2087 = vmatpush.bf16.msra.mxu0 %v1410
    %2088 = vmatpush.bf16.msra.mxu0 %v1406
    %2089 = vmatpush.bf16.msra.mxu0 %v1402
    %2090 = vmatmul.bf16.gmra.mxu0 %v296
    %v2091 = vpop.f32.mrf.mxu0
    %v2092 = vadd.f32 %v2079, %v2091
    %v2093 = vpop.f32.mrf.mxu0
    %2094 = vdwg.mxu0
    %2095 = vmatpush.bf16.msra.mxu0 %v1462
    %2096 = vmatpush.bf16.msra.mxu0 %v1458
    %2097 = vmatpush.bf16.msra.mxu0 %v1454
    %2098 = vmatpush.bf16.msra.mxu0 %v1450
    %2099 = vmatpush.bf16.msra.mxu0 %v1446
    %2100 = vmatpush.bf16.msra.mxu0 %v1442
    %2101 = vmatpush.bf16.msra.mxu0 %v1438
    %2102 = vmatpush.bf16.msra.mxu0 %v1434
    %2103 = vmatmul.bf16.gmra.mxu0 %v297
    %v2104 = vpop.f32.mrf.mxu0
    %v2105 = vadd.f32 %v2092, %v2104
    %v2106 = vpop.f32.mrf.mxu0
    %2107 = vdwg.mxu0
    %2108 = vmatpush.bf16.msra.mxu0 %v1494
    %2109 = vmatpush.bf16.msra.mxu0 %v1490
    %2110 = vmatpush.bf16.msra.mxu0 %v1486
    %2111 = vmatpush.bf16.msra.mxu0 %v1482
    %2112 = vmatpush.bf16.msra.mxu0 %v1478
    %2113 = vmatpush.bf16.msra.mxu0 %v1474
    %2114 = vmatpush.bf16.msra.mxu0 %v1470
    %2115 = vmatpush.bf16.msra.mxu0 %v1466
    %2116 = vmatmul.bf16.gmra.mxu0 %v298
    %v2117 = vpop.f32.mrf.mxu0
    %v2118 = vadd.f32 %v2105, %v2117
    %v2119 = vpop.f32.mrf.mxu0
    %2120 = vdwg.mxu0
    %2121 = vmatpush.bf16.msra.mxu0 %v1526
    %2122 = vmatpush.bf16.msra.mxu0 %v1522
    %2123 = vmatpush.bf16.msra.mxu0 %v1518
    %2124 = vmatpush.bf16.msra.mxu0 %v1514
    %2125 = vmatpush.bf16.msra.mxu0 %v1510
    %2126 = vmatpush.bf16.msra.mxu0 %v1506
    %2127 = vmatpush.bf16.msra.mxu0 %v1502
    %2128 = vmatpush.bf16.msra.mxu0 %v1498
    %2129 = vmatmul.bf16.gmra.mxu0 %v299
    %v2130 = vpop.f32.mrf.mxu0
    %v2131 = vadd.f32 %v2118, %v2130
    %v2132 = vpop.f32.mrf.mxu0
    %2133 = vdwg.mxu0
    %2134 = vmatpush.bf16.msra.mxu0 %v1558
    %2135 = vmatpush.bf16.msra.mxu0 %v1554
    %2136 = vmatpush.bf16.msra.mxu0 %v1550
    %2137 = vmatpush.bf16.msra.mxu0 %v1546
    %2138 = vmatpush.bf16.msra.mxu0 %v1542
    %2139 = vmatpush.bf16.msra.mxu0 %v1538
    %2140 = vmatpush.bf16.msra.mxu0 %v1534
    %2141 = vmatpush.bf16.msra.mxu0 %v1530
    %2142 = vmatmul.bf16.gmra.mxu0 %v300
    %v2143 = vpop.f32.mrf.mxu0
    %v2144 = vadd.f32 %v2131, %v2143
    %v2145 = vpop.f32.mrf.mxu0
    %2146 = vdwg.mxu0
    %2147 = vmatpush.bf16.msra.mxu0 %v1590
    %2148 = vmatpush.bf16.msra.mxu0 %v1586
    %2149 = vmatpush.bf16.msra.mxu0 %v1582
    %2150 = vmatpush.bf16.msra.mxu0 %v1578
    %2151 = vmatpush.bf16.msra.mxu0 %v1574
    %2152 = vmatpush.bf16.msra.mxu0 %v1570
    %2153 = vmatpush.bf16.msra.mxu0 %v1566
    %2154 = vmatpush.bf16.msra.mxu0 %v1562
    %2155 = vmatmul.bf16.gmra.mxu0 %v301
    %v2156 = vpop.f32.mrf.mxu0
    %v2157 = vadd.f32 %v2144, %v2156
    %v2158 = vpop.f32.mrf.mxu0
    %2159 = vdwg.mxu0
    %2160 = vmatpush.bf16.msra.mxu0 %v1367
    %2161 = vmatpush.bf16.msra.mxu0 %v1363
    %2162 = vmatpush.bf16.msra.mxu0 %v1359
    %2163 = vmatpush.bf16.msra.mxu0 %v1355
    %2164 = vmatpush.bf16.msra.mxu0 %v1351
    %2165 = vmatpush.bf16.msra.mxu0 %v1347
    %2166 = vmatpush.bf16.msra.mxu0 %v1343
    %2167 = vmatpush.bf16.msra.mxu0 %v1339
    %2168 = vmatmul.bf16.gmra.mxu0 %v294
    %v2169 = vpop.f32.mrf.mxu0
    %v2170 = vadd.f32 %v563, %v2169
    %v2171 = vpop.f32.mrf.mxu0
    %2172 = vdwg.mxu0
    %2173 = vmatpush.bf16.msra.mxu0 %v1399
    %2174 = vmatpush.bf16.msra.mxu0 %v1395
    %2175 = vmatpush.bf16.msra.mxu0 %v1391
    %2176 = vmatpush.bf16.msra.mxu0 %v1387
    %2177 = vmatpush.bf16.msra.mxu0 %v1383
    %2178 = vmatpush.bf16.msra.mxu0 %v1379
    %2179 = vmatpush.bf16.msra.mxu0 %v1375
    %2180 = vmatpush.bf16.msra.mxu0 %v1371
    %2181 = vmatmul.bf16.gmra.mxu0 %v295
    %v2182 = vpop.f32.mrf.mxu0
    %v2183 = vadd.f32 %v2170, %v2182
    %v2184 = vpop.f32.mrf.mxu0
    %2185 = vdwg.mxu0
    %2186 = vmatpush.bf16.msra.mxu0 %v1431
    %2187 = vmatpush.bf16.msra.mxu0 %v1427
    %2188 = vmatpush.bf16.msra.mxu0 %v1423
    %2189 = vmatpush.bf16.msra.mxu0 %v1419
    %2190 = vmatpush.bf16.msra.mxu0 %v1415
    %2191 = vmatpush.bf16.msra.mxu0 %v1411
    %2192 = vmatpush.bf16.msra.mxu0 %v1407
    %2193 = vmatpush.bf16.msra.mxu0 %v1403
    %2194 = vmatmul.bf16.gmra.mxu0 %v296
    %v2195 = vpop.f32.mrf.mxu0
    %v2196 = vadd.f32 %v2183, %v2195
    %v2197 = vpop.f32.mrf.mxu0
    %2198 = vdwg.mxu0
    %2199 = vmatpush.bf16.msra.mxu0 %v1463
    %2200 = vmatpush.bf16.msra.mxu0 %v1459
    %2201 = vmatpush.bf16.msra.mxu0 %v1455
    %2202 = vmatpush.bf16.msra.mxu0 %v1451
    %2203 = vmatpush.bf16.msra.mxu0 %v1447
    %2204 = vmatpush.bf16.msra.mxu0 %v1443
    %2205 = vmatpush.bf16.msra.mxu0 %v1439
    %2206 = vmatpush.bf16.msra.mxu0 %v1435
    %2207 = vmatmul.bf16.gmra.mxu0 %v297
    %v2208 = vpop.f32.mrf.mxu0
    %v2209 = vadd.f32 %v2196, %v2208
    %v2210 = vpop.f32.mrf.mxu0
    %2211 = vdwg.mxu0
    %2212 = vmatpush.bf16.msra.mxu0 %v1495
    %2213 = vmatpush.bf16.msra.mxu0 %v1491
    %2214 = vmatpush.bf16.msra.mxu0 %v1487
    %2215 = vmatpush.bf16.msra.mxu0 %v1483
    %2216 = vmatpush.bf16.msra.mxu0 %v1479
    %2217 = vmatpush.bf16.msra.mxu0 %v1475
    %2218 = vmatpush.bf16.msra.mxu0 %v1471
    %2219 = vmatpush.bf16.msra.mxu0 %v1467
    %2220 = vmatmul.bf16.gmra.mxu0 %v298
    %v2221 = vpop.f32.mrf.mxu0
    %v2222 = vadd.f32 %v2209, %v2221
    %v2223 = vpop.f32.mrf.mxu0
    %2224 = vdwg.mxu0
    %2225 = vmatpush.bf16.msra.mxu0 %v1527
    %2226 = vmatpush.bf16.msra.mxu0 %v1523
    %2227 = vmatpush.bf16.msra.mxu0 %v1519
    %2228 = vmatpush.bf16.msra.mxu0 %v1515
    %2229 = vmatpush.bf16.msra.mxu0 %v1511
    %2230 = vmatpush.bf16.msra.mxu0 %v1507
    %2231 = vmatpush.bf16.msra.mxu0 %v1503
    %2232 = vmatpush.bf16.msra.mxu0 %v1499
    %2233 = vmatmul.bf16.gmra.mxu0 %v299
    %v2234 = vpop.f32.mrf.mxu0
    %v2235 = vadd.f32 %v2222, %v2234
    %v2236 = vpop.f32.mrf.mxu0
    %2237 = vdwg.mxu0
    %2238 = vmatpush.bf16.msra.mxu0 %v1559
    %2239 = vmatpush.bf16.msra.mxu0 %v1555
    %2240 = vmatpush.bf16.msra.mxu0 %v1551
    %2241 = vmatpush.bf16.msra.mxu0 %v1547
    %2242 = vmatpush.bf16.msra.mxu0 %v1543
    %2243 = vmatpush.bf16.msra.mxu0 %v1539
    %2244 = vmatpush.bf16.msra.mxu0 %v1535
    %2245 = vmatpush.bf16.msra.mxu0 %v1531
    %2246 = vmatmul.bf16.gmra.mxu0 %v300
    %v2247 = vpop.f32.mrf.mxu0
    %v2248 = vadd.f32 %v2235, %v2247
    %v2249 = vpop.f32.mrf.mxu0
    %2250 = vdwg.mxu0
    %2251 = vmatpush.bf16.msra.mxu0 %v1591
    %2252 = vmatpush.bf16.msra.mxu0 %v1587
    %2253 = vmatpush.bf16.msra.mxu0 %v1583
    %2254 = vmatpush.bf16.msra.mxu0 %v1579
    %2255 = vmatpush.bf16.msra.mxu0 %v1575
    %2256 = vmatpush.bf16.msra.mxu0 %v1571
    %2257 = vmatpush.bf16.msra.mxu0 %v1567
    %2258 = vmatpush.bf16.msra.mxu0 %v1563
    %2259 = vmatmul.bf16.gmra.mxu0 %v301
    %v2260 = vpop.f32.mrf.mxu0
    %v2261 = vadd.f32 %v2248, %v2260
    %v2262 = vpop.f32.mrf.mxu0
    %2263 = vdwg.mxu0
    %v2264 = vpack.c.bf16 %v2053, %v1949
    %v2265 = vpack.c.bf16 %v2261, %v2157
    %v2266 = vunpack.c.l.bf16 %v2264
    %v2267 = vunpack.c.h.bf16 %v2264
    %v2268 = vunpack.c.l.bf16 %v2265
    %v2269 = vunpack.c.h.bf16 %v2265
    %v2270 = vmax.f32 %v2266, 0.0
    %v2271 = vmax.f32 %v2267, 0.0
    %v2272 = vmax.f32 %v2268, 0.0
    %v2273 = vmax.f32 %v2269, 0.0
    %v2274 = vpack.c.bf16 %v2270, %v2270
    %v2275 = vpack.c.bf16 %v2271, %v2271
    %v2276 = vpack.c.bf16 %v2272, %v2272
    %v2277 = vpack.c.bf16 %v2273, %v2273
    %v2278 = vld [vmem:[#allocation10] sm:$0xf]
    %v2279 = vld [vmem:[#allocation10 + $0x4] sm:$0xf]
    %v2280 = vld [vmem:[#allocation10 + $0x8] sm:$0xf]
    %v2281 = vld [vmem:[#allocation10 + $0xc] sm:$0xf]
    %v2282 = vld [vmem:[#allocation10 + $0x10] sm:$0xf]
    %v2283 = vld [vmem:[#allocation10 + $0x14] sm:$0xf]
    %v2284 = vld [vmem:[#allocation10 + $0x18] sm:$0xf]
    %v2285 = vld [vmem:[#allocation10 + $0x1c] sm:$0xf]
    %v2286 = vld [vmem:[#allocation10 + $0x20] sm:$0xf]
    %v2287 = vld [vmem:[#allocation10 + $0x24] sm:$0xf]
    %v2288 = vld [vmem:[#allocation10 + $0x28] sm:$0xf]
    %v2289 = vld [vmem:[#allocation10 + $0x2c] sm:$0xf]
    %v2290 = vld [vmem:[#allocation10 + $0x30] sm:$0xf]
    %v2291 = vld [vmem:[#allocation10 + $0x34] sm:$0xf]
    %v2292 = vld [vmem:[#allocation10 + $0x38] sm:$0xf]
    %v2293 = vld [vmem:[#allocation10 + $0x3c] sm:$0xf]
    %v2294 = vld [vmem:[#allocation10 + $0x40] sm:$0xf]
    %v2295 = vld [vmem:[#allocation10 + $0x44] sm:$0xf]
    %v2296 = vld [vmem:[#allocation10 + $0x48] sm:$0xf]
    %v2297 = vld [vmem:[#allocation10 + $0x4c] sm:$0xf]
    %v2298 = vld [vmem:[#allocation10 + $0x50] sm:$0xf]
    %v2299 = vld [vmem:[#allocation10 + $0x54] sm:$0xf]
    %v2300 = vld [vmem:[#allocation10 + $0x58] sm:$0xf]
    %v2301 = vld [vmem:[#allocation10 + $0x5c] sm:$0xf]
    %v2302 = vld [vmem:[#allocation10 + $0x60] sm:$0xf]
    %v2303 = vld [vmem:[#allocation10 + $0x64] sm:$0xf]
    %v2304 = vld [vmem:[#allocation10 + $0x68] sm:$0xf]
    %v2305 = vld [vmem:[#allocation10 + $0x6c] sm:$0xf]
    %v2306 = vld [vmem:[#allocation10 + $0x70] sm:$0xf]
    %v2307 = vld [vmem:[#allocation10 + $0x74] sm:$0xf]
    %v2308 = vld [vmem:[#allocation10 + $0x78] sm:$0xf]
    %v2309 = vld [vmem:[#allocation10 + $0x7c] sm:$0xf]
    %v2310 = vld [vmem:[#allocation10 + $0x80] sm:$0xf]
    %v2311 = vld [vmem:[#allocation10 + $0x84] sm:$0xf]
    %v2312 = vld [vmem:[#allocation10 + $0x88] sm:$0xf]
    %v2313 = vld [vmem:[#allocation10 + $0x8c] sm:$0xf]
    %v2314 = vld [vmem:[#allocation10 + $0x90] sm:$0xf]
    %v2315 = vld [vmem:[#allocation10 + $0x94] sm:$0xf]
    %v2316 = vld [vmem:[#allocation10 + $0x98] sm:$0xf]
    %v2317 = vld [vmem:[#allocation10 + $0x9c] sm:$0xf]
    %v2318 = vld [vmem:[#allocation10 + $0xa0] sm:$0xf]
    %v2319 = vld [vmem:[#allocation10 + $0xa4] sm:$0xf]
    %v2320 = vld [vmem:[#allocation10 + $0xa8] sm:$0xf]
    %v2321 = vld [vmem:[#allocation10 + $0xac] sm:$0xf]
    %v2322 = vld [vmem:[#allocation10 + $0xb0] sm:$0xf]
    %v2323 = vld [vmem:[#allocation10 + $0xb4] sm:$0xf]
    %v2324 = vld [vmem:[#allocation10 + $0xb8] sm:$0xf]
    %v2325 = vld [vmem:[#allocation10 + $0xbc] sm:$0xf]
    %v2326 = vld [vmem:[#allocation10 + $0xc0] sm:$0xf]
    %v2327 = vld [vmem:[#allocation10 + $0xc4] sm:$0xf]
    %v2328 = vld [vmem:[#allocation10 + $0xc8] sm:$0xf]
    %v2329 = vld [vmem:[#allocation10 + $0xcc] sm:$0xf]
    %v2330 = vld [vmem:[#allocation10 + $0xd0] sm:$0xf]
    %v2331 = vld [vmem:[#allocation10 + $0xd4] sm:$0xf]
    %v2332 = vld [vmem:[#allocation10 + $0xd8] sm:$0xf]
    %v2333 = vld [vmem:[#allocation10 + $0xdc] sm:$0xf]
    %v2334 = vld [vmem:[#allocation10 + $0xe0] sm:$0xf]
    %v2335 = vld [vmem:[#allocation10 + $0xe4] sm:$0xf]
    %v2336 = vld [vmem:[#allocation10 + $0xe8] sm:$0xf]
    %v2337 = vld [vmem:[#allocation10 + $0xec] sm:$0xf]
    %v2338 = vld [vmem:[#allocation10 + $0xf0] sm:$0xf]
    %v2339 = vld [vmem:[#allocation10 + $0xf4] sm:$0xf]
    %v2340 = vld [vmem:[#allocation10 + $0xf8] sm:$0xf]
    %v2341 = vld [vmem:[#allocation10 + $0xfc] sm:$0xf]
    %v2342 = vld [vmem:[%s5] sm:$0x1]
    %v2344 = vperm.slane %v2342, 0
    %v2410 = vunpack.c.l.b16 %v2278
    %v2411 = vunpack.c.l.b16 %v2279
    %v2412 = vunpack.c.l.b16 %v2280
    %v2413 = vunpack.c.l.b16 %v2281
    %v2414 = vunpack.c.l.b16 %v2282
    %v2415 = vunpack.c.l.b16 %v2283
    %v2416 = vunpack.c.l.b16 %v2284
    %v2417 = vunpack.c.l.b16 %v2285
    %v2418 = vunpack.c.l.b16 %v2286
    %v2419 = vunpack.c.l.b16 %v2287
    %v2420 = vunpack.c.l.b16 %v2288
    %v2421 = vunpack.c.l.b16 %v2289
    %v2422 = vunpack.c.l.b16 %v2290
    %v2423 = vunpack.c.l.b16 %v2291
    %v2424 = vunpack.c.l.b16 %v2292
    %v2425 = vunpack.c.l.b16 %v2293
    %v2426 = vunpack.c.l.b16 %v2294
    %v2427 = vunpack.c.l.b16 %v2295
    %v2428 = vunpack.c.l.b16 %v2296
    %v2429 = vunpack.c.l.b16 %v2297
    %v2430 = vunpack.c.l.b16 %v2298
    %v2431 = vunpack.c.l.b16 %v2299
    %v2432 = vunpack.c.l.b16 %v2300
    %v2433 = vunpack.c.l.b16 %v2301
    %v2434 = vunpack.c.l.b16 %v2302
    %v2435 = vunpack.c.l.b16 %v2303
    %v2436 = vunpack.c.l.b16 %v2304
    %v2437 = vunpack.c.l.b16 %v2305
    %v2438 = vunpack.c.l.b16 %v2306
    %v2439 = vunpack.c.l.b16 %v2307
    %v2440 = vunpack.c.l.b16 %v2308
    %v2441 = vunpack.c.l.b16 %v2309
    %v2442 = vunpack.c.l.b16 %v2310
    %v2443 = vunpack.c.l.b16 %v2311
    %v2444 = vunpack.c.l.b16 %v2312
    %v2445 = vunpack.c.l.b16 %v2313
    %v2446 = vunpack.c.l.b16 %v2314
    %v2447 = vunpack.c.l.b16 %v2315
    %v2448 = vunpack.c.l.b16 %v2316
    %v2449 = vunpack.c.l.b16 %v2317
    %v2450 = vunpack.c.l.b16 %v2318
    %v2451 = vunpack.c.l.b16 %v2319
    %v2452 = vunpack.c.l.b16 %v2320
    %v2453 = vunpack.c.l.b16 %v2321
    %v2454 = vunpack.c.l.b16 %v2322
    %v2455 = vunpack.c.l.b16 %v2323
    %v2456 = vunpack.c.l.b16 %v2324
    %v2457 = vunpack.c.l.b16 %v2325
    %v2458 = vunpack.c.l.b16 %v2326
    %v2459 = vunpack.c.l.b16 %v2327
    %v2460 = vunpack.c.l.b16 %v2328
    %v2461 = vunpack.c.l.b16 %v2329
    %v2462 = vunpack.c.l.b16 %v2330
    %v2463 = vunpack.c.l.b16 %v2331
    %v2464 = vunpack.c.l.b16 %v2332
    %v2465 = vunpack.c.l.b16 %v2333
    %v2466 = vunpack.c.l.b16 %v2334
    %v2467 = vunpack.c.l.b16 %v2335
    %v2468 = vunpack.c.l.b16 %v2336
    %v2469 = vunpack.c.l.b16 %v2337
    %v2470 = vunpack.c.l.b16 %v2338
    %v2471 = vunpack.c.l.b16 %v2339
    %v2472 = vunpack.c.l.b16 %v2340
    %v2473 = vunpack.c.l.b16 %v2341
    %v2474 = vpack.c.b16 %v2411, %v2410
    %v2475 = vpack.c.b16 %v2413, %v2412
    %v2476 = vpack.c.b16 %v2415, %v2414
    %v2477 = vpack.c.b16 %v2417, %v2416
    %v2478 = vpack.c.b16 %v2419, %v2418
    %v2479 = vpack.c.b16 %v2421, %v2420
    %v2480 = vpack.c.b16 %v2423, %v2422
    %v2481 = vpack.c.b16 %v2425, %v2424
    %v2482 = vpack.c.b16 %v2427, %v2426
    %v2483 = vpack.c.b16 %v2429, %v2428
    %v2484 = vpack.c.b16 %v2431, %v2430
    %v2485 = vpack.c.b16 %v2433, %v2432
    %v2486 = vpack.c.b16 %v2435, %v2434
    %v2487 = vpack.c.b16 %v2437, %v2436
    %v2488 = vpack.c.b16 %v2439, %v2438
    %v2489 = vpack.c.b16 %v2441, %v2440
    %v2490 = vpack.c.b16 %v2443, %v2442
    %v2491 = vpack.c.b16 %v2445, %v2444
    %v2492 = vpack.c.b16 %v2447, %v2446
    %v2493 = vpack.c.b16 %v2449, %v2448
    %v2494 = vpack.c.b16 %v2451, %v2450
    %v2495 = vpack.c.b16 %v2453, %v2452
    %v2496 = vpack.c.b16 %v2455, %v2454
    %v2497 = vpack.c.b16 %v2457, %v2456
    %v2498 = vpack.c.b16 %v2459, %v2458
    %v2499 = vpack.c.b16 %v2461, %v2460
    %v2500 = vpack.c.b16 %v2463, %v2462
    %v2501 = vpack.c.b16 %v2465, %v2464
    %v2502 = vpack.c.b16 %v2467, %v2466
    %v2503 = vpack.c.b16 %v2469, %v2468
    %v2504 = vpack.c.b16 %v2471, %v2470
    %v2505 = vpack.c.b16 %v2473, %v2472
    %2538 = vmatpush.bf16.msra.mxu0 %v2481
    %2539 = vmatpush.bf16.msra.mxu0 %v2480
    %2540 = vmatpush.bf16.msra.mxu0 %v2479
    %2541 = vmatpush.bf16.msra.mxu0 %v2478
    %2542 = vmatpush.bf16.msra.mxu0 %v2477
    %2543 = vmatpush.bf16.msra.mxu0 %v2476
    %2544 = vmatpush.bf16.msra.mxu0 %v2475
    %2545 = vmatpush.bf16.msra.mxu0 %v2474
    %2546 = vmatmul.bf16.gmra.mxu0 %v2274
    %v2547 = vpop.f32.mrf.mxu0
    %v2548 = vadd.f32 %v2344, %v2547
    %v2549 = vpop.f32.mrf.mxu0
    %2550 = vdwg.mxu0
    %2551 = vmatpush.bf16.msra.mxu0 %v2489
    %2552 = vmatpush.bf16.msra.mxu0 %v2488
    %2553 = vmatpush.bf16.msra.mxu0 %v2487
    %2554 = vmatpush.bf16.msra.mxu0 %v2486
    %2555 = vmatpush.bf16.msra.mxu0 %v2485
    %2556 = vmatpush.bf16.msra.mxu0 %v2484
    %2557 = vmatpush.bf16.msra.mxu0 %v2483
    %2558 = vmatpush.bf16.msra.mxu0 %v2482
    %2559 = vmatmul.bf16.gmra.mxu0 %v2275
    %v2560 = vpop.f32.mrf.mxu0
    %v2561 = vadd.f32 %v2548, %v2560
    %v2562 = vpop.f32.mrf.mxu0
    %2563 = vdwg.mxu0
    %2564 = vmatpush.bf16.msra.mxu0 %v2497
    %2565 = vmatpush.bf16.msra.mxu0 %v2496
    %2566 = vmatpush.bf16.msra.mxu0 %v2495
    %2567 = vmatpush.bf16.msra.mxu0 %v2494
    %2568 = vmatpush.bf16.msra.mxu0 %v2493
    %2569 = vmatpush.bf16.msra.mxu0 %v2492
    %2570 = vmatpush.bf16.msra.mxu0 %v2491
    %2571 = vmatpush.bf16.msra.mxu0 %v2490
    %2572 = vmatmul.bf16.gmra.mxu0 %v2276
    %v2573 = vpop.f32.mrf.mxu0
    %v2574 = vadd.f32 %v2561, %v2573
    %v2575 = vpop.f32.mrf.mxu0
    %2576 = vdwg.mxu0
    %2577 = vmatpush.bf16.msra.mxu0 %v2505
    %2578 = vmatpush.bf16.msra.mxu0 %v2504
    %2579 = vmatpush.bf16.msra.mxu0 %v2503
    %2580 = vmatpush.bf16.msra.mxu0 %v2502
    %2581 = vmatpush.bf16.msra.mxu0 %v2501
    %2582 = vmatpush.bf16.msra.mxu0 %v2500
    %2583 = vmatpush.bf16.msra.mxu0 %v2499
    %2584 = vmatpush.bf16.msra.mxu0 %v2498
    %2585 = vmatmul.bf16.gmra.mxu0 %v2277
    %v2586 = vpop.f32.mrf.mxu0
    %v2587 = vadd.f32 %v2574, %v2586
    %v2588 = vpop.f32.mrf.mxu0
    %2589 = vdwg.mxu0
    %2590 = vst [vmem:[#allocation11] sm:$0xff] %v2587
    // Predicated region
    $region46: #{tpu_custom_call.1} parent=1 // pred_check
      _
    $region47: #{tpu_custom_call.1} parent=1 // pred_check_branch
      %2592 = sbr.rel (0) target = $region49
    $region48: #{tpu_custom_call.1} parent=1 // pred_region
      %2594 = vsyncadd [#allocation4], 0
      %s2596 = sshll.u32 [#allocation11], 4
      %s2597 = int_to_ptr.vmem [resolvable:$true] %s2596
      %s2598 = sshll.u32 %s6, 4
      %s2599 = int_to_ptr.hbm [resolvable:$true] %s2598
      %2601 = dma.vmem_to_hbm [thread:$0]  %s2597, 128, %s2599, [#allocation4]
    $region49: #{tpu_custom_call.1} parent=1 // pred_fallthru
      _
    // Predicated region
    $region50: #{tpu_custom_call.1} parent=1 // pred_check
      _
    $region51: #{tpu_custom_call.1} parent=1 // pred_check_branch
      %2603 = sbr.rel (0) target = $region53
    $region52: #{tpu_custom_call.1} parent=1 // pred_region
      %2605 = dma.done [#allocation4], 128
    $region53: #{tpu_custom_call.1} parent=1 // pred_fallthru
      _
    %2606 = vsyncpa [#allocation3], 1
    %2607 = vsyncpa [#allocation6], 1
    %2608 = vsyncpa [#allocation9], 1
    %2609 = vsyncpa [#allocation4], 1

</llo_original>
